<compile_context>
chip_gen: v7x
topology: tpu7x:2x2x1
jax: 0.10.0
libtpu: 0.0.40
codegen_flags: <defaults>
</compile_context>

<pallas_src>
import math

import jax
import jax.numpy as jnp
from jax.experimental import pallas as pl
from jax.experimental.pallas import tpu as pltpu


def make_flash_mha_kernel(num_heads, d_per_head, d_model, compute_dtype):
    H, dh, D = num_heads, d_per_head, d_model

    def kernel(q_ref, k_ref, v_ref, bias_ref, wo_ref, bo_ref, o_ref,
               m_sc, l_sc, acc_sc):
        kv = pl.program_id(2)

        # --- init online-softmax state at the first kv tile -------------------
        @pl.when(kv == 0)
        def _():
            m_sc[...] = jnp.full(m_sc.shape, -jnp.inf, m_sc.dtype)
            l_sc[...] = jnp.zeros(l_sc.shape, l_sc.dtype)
            acc_sc[...] = jnp.zeros(acc_sc.shape, acc_sc.dtype)

        qh = q_ref[0]                                   # (H, tq, dh) bf16
        kh = k_ref[0]                                   # (H, tk, dh) bf16
        vh = v_ref[0]                                   # (H, tk, dh) bf16

        # scores[h] = q_h @ k_h^T  (1/sqrt(dh) already folded into q), head-batched
        # MXU contraction over dh with no explicit transpose of K.
        s = jax.lax.dot_general(
            qh, kh, dimension_numbers=(((2,), (2,)), ((0,), (0,))),
            preferred_element_type=jnp.float32)         # (H, tq, tk) f32
        s = s + bias_ref[0].astype(jnp.float32)[None, :, :]

        # --- online softmax update (f32 math) ---------------------------------
        m_prev = m_sc[...]                              # (H, tq, 1)
        m_new = jnp.maximum(m_prev, jnp.max(s, axis=-1, keepdims=True))
        alpha = jnp.exp(m_prev - m_new)                 # rescale of old state
        p = jnp.exp(s - m_new)                          # (H, tq, tk), UN-normalized
        l_sc[...] = alpha * l_sc[...] + jnp.sum(p, axis=-1, keepdims=True)

        # ctx[h] += p_h @ v_h — head-batched, bf16 operands, f32 accumulation.
        ctx = jax.lax.dot_general(
            p.astype(vh.dtype), vh,
            dimension_numbers=(((2,), (1,)), ((0,), (0,))),
            preferred_element_type=jnp.float32)         # (H, tq, dh)
        acc_sc[...] = alpha * acc_sc[...] + ctx
        m_sc[...] = m_new

        # --- finalize: deferred normalization + folded output projection ------
        @pl.when(kv == pl.num_programs(2) - 1)
        def _():
            # Normalize the small (H, tq, dh) accumulator, not the (H, tq, tk) p.
            ctx_n = acc_sc[...] * pl.reciprocal(l_sc[...], approx=True)
            # out = sum_h ctx_h @ Wo[h]  ==  concat_h(ctx_h) @ Wo  -> (tq, D),
            # lane-dense, no concatenate / head relayout.
            # TODO(synk): if bundle dumps show vmatmul saturating, merge heads to
            # a single (tq, D) @ (D, D) matmul for full MXU contraction depth.
            out_h = jax.lax.dot_general(
                ctx_n.astype(wo_ref.dtype), wo_ref[...],
                dimension_numbers=(((2,), (1,)), ((0,), (0,))),
                preferred_element_type=jnp.float32)     # (H, tq, D)
            out = jnp.sum(out_h, axis=0) + bo_ref[...]
            o_ref[0] = out.astype(o_ref.dtype)

    return kernel


def build_spatial_bias(B, S, spatial):
    """Scatter relational embeddings into an additive (B, S, S) score bias.

    Mirrors the PyTorch in-place adds on `scores` (bias is head-independent, so it
    folds into one (B, S, S) tensor added to every head's scores).  Gather-then-set
    is used so duplicate (b, i, j) pairs *within one statement* apply the embedding
    only once (PyTorch advanced-indexing `+=` semantics); sequential statements
    still accumulate because each reads the previously updated bias.
    """
    bias = jnp.zeros((B, S, S), jnp.float32)
    if spatial is None:
        return bias
    pc, sib, emb = spatial

    def add_once(b, ib, ii, ij, val):
        cur = b[ib, ii, ij]
        return b.at[ib, ii, ij].set(cur + val)

    bias = add_once(bias, pc[:, 0], pc[:, 1], pc[:, 2], emb[0])
    bias = add_once(bias, pc[:, 0], pc[:, 2], pc[:, 1], emb[1])
    bias = add_once(bias, sib[:, 0], sib[:, 1], sib[:, 2], emb[2])
    bias = add_once(bias, sib[:, 0], sib[:, 2], sib[:, 1], emb[2])
    return bias


def _vmem_limit_bytes():
    # Generation-aware: ~75% of per-core VMEM, never the full capacity (leave
    # headroom for Mosaic scratch + double buffers).  48 MiB fallback is safe on
    # every generation (v7x: 64 MiB physical, v5e/v6e: 128 MiB physical).
    try:
        cap = int(pltpu.get_tpu_info().vmem_capacity_bytes)
        return max(32 * 1024 * 1024, min(int(cap * 0.75), 100 * 1024 * 1024))
    except Exception:
        return 48 * 1024 * 1024


def _pick_tile(S, preferred):
    for t in preferred:
        if t <= S and S % t == 0:
            return t
    return S


def multihead_attention(query, key, value, spatial, params, num_heads):
    B, S, D = query.shape
    H = num_heads
    dh = D // H
    inv_norm = 1.0 / math.sqrt(float(dh))
    out_dtype = query.dtype
    cdt = jnp.bfloat16                     # MXU operand dtype

    wq, bq, wk, bk, wv, bv, wo, bo = params

    # -------- wrapper-side (one-time, XLA) work -------------------------------
    # Hoist the Q/K/V projections + head split out of the kernel: compute them
    # once in f32, head-major (B, H, S, dh), fold 1/sqrt(dh) into the Q branch,
    # then cast to bf16 for the MXU.  This removes the S/tq-fold redundant K/V
    # projection of the previous kernel and all in-kernel head slicing.
    def project_heads(x, w_t, b_row):
        y = x @ w_t + b_row                               # (B, S, D) f32
        return y.reshape(B, S, H, dh).transpose(0, 2, 1, 3)  # (B, H, S, dh)

    q_h = project_heads(query.astype(jnp.float32), wq.T * inv_norm,
                        bq * inv_norm).astype(cdt)
    k_h = project_heads(key.astype(jnp.float32), wk.T, bk).astype(cdt)
    v_h = project_heads(value.astype(jnp.float32), wv.T, bv).astype(cdt)

    # Per-head output-projection slabs for the folded in-kernel projection.
    wo_h = wo.T.reshape(H, dh, D).astype(cdt)
    bo_r = bo.reshape(1, D).astype(jnp.float32)

    # Dense additive bias (bf16 halves its HBM stream; values are O(0.1-1)).
    bias = build_spatial_bias(B, S, spatial).astype(cdt)   # (B, S, S)

    # -------- tiling ----------------------------------------------------------
    # tq=128 keeps enough grid steps for pipelining / dual-TC sharding; tk larger
    # to amortize per-step overhead.  Fallback to full S only when S % 128 != 0.
    tq = _pick_tile(S, (128,))
    tk = _pick_tile(S, (512, 256, 128))
    grid = (B, S // tq, S // tk)           # kv innermost ("arbitrary") axis

    kernel = make_flash_mha_kernel(H, dh, D, cdt)

    q_spec = pl.BlockSpec((1, H, tq, dh), lambda b, qi, kv: (b, 0, qi, 0))
    kv_spec = pl.BlockSpec((1, H, tk, dh), lambda b, qi, kv: (b, 0, kv, 0))
    bias_spec = pl.BlockSpec((1, tq, tk), lambda b, qi, kv: (b, qi, kv))
    wo_spec = pl.BlockSpec((H, dh, D), lambda b, qi, kv: (0, 0, 0))   # constant
    bo_spec = pl.BlockSpec((1, D), lambda b, qi, kv: (0, 0))          # constant
    out_spec = pl.BlockSpec((1, tq, D), lambda b, qi, kv: (b, qi, 0))  # resident over kv

    out = pl.pallas_call(
        kernel,
        out_shape=jax.ShapeDtypeStruct((B, S, D), out_dtype),
        grid=grid,
        in_specs=[q_spec, kv_spec, kv_spec, bias_spec, wo_spec, bo_spec],
        out_specs=out_spec,
        scratch_shapes=[
            pltpu.VMEM((H, tq, 1), jnp.float32),    # m (running max)
            pltpu.VMEM((H, tq, 1), jnp.float32),    # l (running denom)
            pltpu.VMEM((H, tq, dh), jnp.float32),   # un-normalized p@V accumulator
        ],
        compiler_params=pltpu.CompilerParams(
            dimension_semantics=("parallel", "parallel", "arbitrary"),
            vmem_limit_bytes=_vmem_limit_bytes()),
    )(q_h, k_h, v_h, bias, wo_h, bo_r)
    return out


def reference_mha(query, key, value, spatial, params, num_heads):
    """Pure-JAX f32 reference replicating the PyTorch forward exactly."""
    B, S, D = query.shape
    dh = D // num_heads
    norm = math.sqrt(float(dh))
    wq, bq, wk, bk, wv, bv, wo, bo = params

    q = query @ wq.T + bq
    k = key @ wk.T + bk
    v = value @ wv.T + bv
    q = q.reshape(B, S, num_heads, dh).transpose(0, 2, 1, 3)
    k = k.reshape(B, S, num_heads, dh).transpose(0, 2, 1, 3)
    v = v.reshape(B, S, num_heads, dh).transpose(0, 2, 1, 3)
    scores = jnp.einsum('bhqd,bhkd->bhqk', q, k) / norm
    bias = build_spatial_bias(B, S, spatial)
    scores = scores + bias[:, None, :, :]
    attn = jax.nn.softmax(scores, axis=-1)
    x = jnp.einsum('bhqk,bhkd->bhqd', attn, v)
    x = x.transpose(0, 2, 1, 3).reshape(B, S, D)
    return x @ wo.T + bo


if __name__ == "__main__":
    B, S, d_model, num_heads = 2, 8, 32, 4

    key0 = jax.random.PRNGKey(0)
    keys = jax.random.split(key0, 16)

    # Deterministic parameter init (PyTorch nn.Linear-like uniform ranges).
    def linear_init(kw, kb, fan_in, shape_w):
        bound = 1.0 / math.sqrt(fan_in)
        w = jax.random.uniform(kw, shape_w, jnp.float32, -bound, bound)
        b = jax.random.uniform(kb, (shape_w[0],), jnp.float32, -bound, bound)
        return w, b

    wq, bq = linear_init(keys[0], keys[1], d_model, (d_model, d_model))
    wk, bk = linear_init(keys[2], keys[3], d_model, (d_model, d_model))
    wv, bv = linear_init(keys[4], keys[5], d_model, (d_model, d_model))
    wo, bo = linear_init(keys[6], keys[7], d_model, (d_model, d_model))
    params = (wq, bq, wk, bk, wv, bv, wo, bo)

    query = jax.random.normal(keys[8], (B, S, d_model), jnp.float32)
    key_in = jax.random.normal(keys[9], (B, S, d_model), jnp.float32)
    value = jax.random.normal(keys[10], (B, S, d_model), jnp.float32)

    # spatial = (parentchild_indices, sibling_indices, embeddings)
    parentchild_indices = jnp.array([[0, 1, 2],
                                     [0, 2, 3],
                                     [1, 0, 4]], dtype=jnp.int32)
    sibling_indices = jnp.array([[0, 3, 4],
                                 [1, 5, 6]], dtype=jnp.int32)
    embeddings = jnp.array([0.3, -0.2, 0.5], dtype=jnp.float32)
    spatial = (parentchild_indices, sibling_indices, embeddings)

    out = multihead_attention(query, key_in, value, spatial, params, num_heads)
    out = jax.block_until_ready(out)

    ref = reference_mha(query, key_in, value, spatial, params, num_heads)
    assert out.shape == (B, S, d_model)
    # Tolerance is bf16-MXU limited (bf16 operands + EUP approx reciprocal); the
    # reference is exact f32.  Structural errors would be >> 5e-2.
    assert jnp.allclose(out, ref, atol=5e-2, rtol=5e-2), "mismatch vs reference"

    print("KERNEL_OK")
</pallas_src>

<mosaic_0001>
module attributes {stable_mosaic.version = 11 : i64} {
  func.func @kernel(%arg0: i32, %arg1: i32, %arg2: i32, %arg3: memref<1x4x8x8xbf16, #tpu.memory_space<vmem>>, %arg4: memref<1x4x8x8xbf16, #tpu.memory_space<vmem>>, %arg5: memref<1x4x8x8xbf16, #tpu.memory_space<vmem>>, %arg6: memref<1x8x8xbf16, #tpu.memory_space<vmem>>, %arg7: memref<4x8x32xbf16, #tpu.memory_space<vmem>>, %arg8: memref<1x32xf32, #tpu.memory_space<vmem>>, %arg9: memref<1x8x32xf32, #tpu.memory_space<vmem>>, %arg10: memref<4x8x1xf32, #tpu.memory_space<vmem>>, %arg11: memref<4x8x1xf32, #tpu.memory_space<vmem>>, %arg12: memref<4x8x8xf32, #tpu.memory_space<vmem>>) attributes {dimension_semantics = [#tpu.dimension_semantics<parallel>, #tpu.dimension_semantics<parallel>, #tpu.dimension_semantics<arbitrary>], iteration_bounds = array<i64: 2, 1, 1>, scalar_prefetch = 0 : i64, scratch_operands = 3 : i64, tpu.core_type = #tpu.core_type<tc>, window_params = [{transform_indices = @transform_0, window_bounds = array<i64: 1, 4, 8, 8>}, {transform_indices = @transform_1, window_bounds = array<i64: 1, 4, 8, 8>}, {transform_indices = @transform_2, window_bounds = array<i64: 1, 4, 8, 8>}, {transform_indices = @transform_3, window_bounds = array<i64: 1, 8, 8>}, {pipeline_mode = #tpu.pipeline_mode<synchronous>, transform_indices = @transform_4, window_bounds = array<i64: 4, 8, 32>}, {pipeline_mode = #tpu.pipeline_mode<synchronous>, transform_indices = @transform_5, window_bounds = array<i64: 1, 32>}, {transform_indices = @transform_6, window_bounds = array<i64: 1, 8, 32>}]} {
    %c0_i32 = arith.constant 0 : i32
    %0 = arith.cmpi eq, %arg2, %c0_i32 : i32
    %1 = arith.extui %0 : i1 to i32
    %c0_i32_0 = arith.constant 0 : i32
    %2 = arith.cmpi ne, %1, %c0_i32_0 : i32
    scf.if %2 {
      %cst_38 = arith.constant 0xFF800000 : f32
      %42 = vector.broadcast %cst_38 : f32 to vector<4x8x1xf32>
      %c0_39 = arith.constant 0 : index
      %c0_40 = arith.constant 0 : index
      %c0_41 = arith.constant 0 : index
      %43 = vector.load %arg10[%c0_39, %c0_40, %c0_41] : memref<4x8x1xf32, #tpu.memory_space<vmem>>, vector<4x8x1xf32>
      tpu.vector_store %arg10[%c0_39, %c0_40, %c0_41], %42 {strides = array<i32>} : memref<4x8x1xf32, #tpu.memory_space<vmem>>, vector<4x8x1xf32>,
      %cst_42 = arith.constant 0.000000e+00 : f32
      %44 = vector.broadcast %cst_42 : f32 to vector<4x8x1xf32>
      %c0_43 = arith.constant 0 : index
      %c0_44 = arith.constant 0 : index
      %c0_45 = arith.constant 0 : index
      %45 = vector.load %arg11[%c0_43, %c0_44, %c0_45] : memref<4x8x1xf32, #tpu.memory_space<vmem>>, vector<4x8x1xf32>
      tpu.vector_store %arg11[%c0_43, %c0_44, %c0_45], %44 {strides = array<i32>} : memref<4x8x1xf32, #tpu.memory_space<vmem>>, vector<4x8x1xf32>,
      %cst_46 = arith.constant 0.000000e+00 : f32
      %46 = vector.broadcast %cst_46 : f32 to vector<4x8x8xf32>
      %c0_47 = arith.constant 0 : index
      %c0_48 = arith.constant 0 : index
      %c0_49 = arith.constant 0 : index
      %47 = vector.load %arg12[%c0_47, %c0_48, %c0_49] : memref<4x8x8xf32, #tpu.memory_space<vmem>>, vector<4x8x8xf32>
      tpu.vector_store %arg12[%c0_47, %c0_48, %c0_49], %46 {strides = array<i32>} : memref<4x8x8xf32, #tpu.memory_space<vmem>>, vector<4x8x8xf32>,
    } else {
    }
    %c0 = arith.constant 0 : index
    %c0_1 = arith.constant 0 : index
    %c0_2 = arith.constant 0 : index
    %c0_3 = arith.constant 0 : index
    %3 = vector.load %arg3[%c0, %c0_1, %c0_2, %c0_3] : memref<1x4x8x8xbf16, #tpu.memory_space<vmem>>, vector<1x4x8x8xbf16>
    %4 = vector.shape_cast %3 : vector<1x4x8x8xbf16> to vector<4x8x8xbf16>
    %c0_4 = arith.constant 0 : index
    %c0_5 = arith.constant 0 : index
    %c0_6 = arith.constant 0 : index
    %c0_7 = arith.constant 0 : index
    %5 = vector.load %arg4[%c0_4, %c0_5, %c0_6, %c0_7] : memref<1x4x8x8xbf16, #tpu.memory_space<vmem>>, vector<1x4x8x8xbf16>
    %6 = vector.shape_cast %5 : vector<1x4x8x8xbf16> to vector<4x8x8xbf16>
    %c0_8 = arith.constant 0 : index
    %c0_9 = arith.constant 0 : index
    %c0_10 = arith.constant 0 : index
    %c0_11 = arith.constant 0 : index
    %7 = vector.load %arg5[%c0_8, %c0_9, %c0_10, %c0_11] : memref<1x4x8x8xbf16, #tpu.memory_space<vmem>>, vector<1x4x8x8xbf16>
    %8 = vector.shape_cast %7 : vector<1x4x8x8xbf16> to vector<4x8x8xbf16>
    %cst = arith.constant dense<0.000000e+00> : vector<4x8x8xf32>
    %9 = tpu.matmul %4, %6, %cst {dimension_numbers = #tpu.dot_dimension_numbers<[2], [2], [1], [1], [0, 0, 0, 1, 1, 1], [0], [0]>} : vector<4x8x8xbf16>, vector<4x8x8xbf16>, vector<4x8x8xf32> -> vector<4x8x8xf32>
    %c0_12 = arith.constant 0 : index
    %c0_13 = arith.constant 0 : index
    %c0_14 = arith.constant 0 : index
    %10 = vector.load %arg6[%c0_12, %c0_13, %c0_14] : memref<1x8x8xbf16, #tpu.memory_space<vmem>>, vector<1x8x8xbf16>
    %11 = vector.shape_cast %10 : vector<1x8x8xbf16> to vector<8x8xbf16>
    %12 = arith.extf %11 : vector<8x8xbf16> to vector<8x8xf32>
    %13 = vector.shape_cast %12 : vector<8x8xf32> to vector<1x8x8xf32>
    %14 = vector.broadcast %13 : vector<1x8x8xf32> to vector<4x8x8xf32>
    %15 = arith.addf %9, %14 : vector<4x8x8xf32>
    %c0_15 = arith.constant 0 : index
    %c0_16 = arith.constant 0 : index
    %c0_17 = arith.constant 0 : index
    %16 = vector.load %arg10[%c0_15, %c0_16, %c0_17] : memref<4x8x1xf32, #tpu.memory_space<vmem>>, vector<4x8x1xf32>
    %cst_18 = arith.constant dense<0xFF800000> : vector<4x8xf32>
    %17 = vector.multi_reduction <maximumf>, %15, %cst_18 [2] : vector<4x8x8xf32> to vector<4x8xf32>
    %18 = vector.shape_cast %17 : vector<4x8xf32> to vector<4x8x1xf32>
    %19 = arith.maximumf %16, %18 : vector<4x8x1xf32>
    %20 = arith.subf %16, %19 : vector<4x8x1xf32>
    %21 = math.exp %20 : vector<4x8x1xf32>
    %22 = vector.broadcast %19 : vector<4x8x1xf32> to vector<4x8x8xf32>
    %23 = arith.subf %15, %22 : vector<4x8x8xf32>
    %24 = math.exp %23 : vector<4x8x8xf32>
    %c0_19 = arith.constant 0 : index
    %c0_20 = arith.constant 0 : index
    %c0_21 = arith.constant 0 : index
    %25 = vector.load %arg11[%c0_19, %c0_20, %c0_21] : memref<4x8x1xf32, #tpu.memory_space<vmem>>, vector<4x8x1xf32>
    %26 = arith.mulf %21, %25 : vector<4x8x1xf32>
    %cst_22 = arith.constant dense<0.000000e+00> : vector<4x8xf32>
    %27 = vector.multi_reduction <add>, %24, %cst_22 [2] : vector<4x8x8xf32> to vector<4x8xf32>
    %28 = vector.shape_cast %27 : vector<4x8xf32> to vector<4x8x1xf32>
    %29 = arith.addf %26, %28 : vector<4x8x1xf32>
    %c0_23 = arith.constant 0 : index
    %c0_24 = arith.constant 0 : index
    %c0_25 = arith.constant 0 : index
    %30 = vector.load %arg11[%c0_23, %c0_24, %c0_25] : memref<4x8x1xf32, #tpu.memory_space<vmem>>, vector<4x8x1xf32>
    tpu.vector_store %arg11[%c0_23, %c0_24, %c0_25], %29 {strides = array<i32>} : memref<4x8x1xf32, #tpu.memory_space<vmem>>, vector<4x8x1xf32>,
    %31 = arith.truncf %24 : vector<4x8x8xf32> to vector<4x8x8xbf16>
    %cst_26 = arith.constant dense<0.000000e+00> : vector<4x8x8xf32>
    %32 = tpu.matmul %31, %8, %cst_26 {dimension_numbers = #tpu.dot_dimension_numbers<[2], [1], [1], [2], [0, 0, 0, 1, 1, 2], [0], [0]>} : vector<4x8x8xbf16>, vector<4x8x8xbf16>, vector<4x8x8xf32> -> vector<4x8x8xf32>
    %c0_27 = arith.constant 0 : index
    %c0_28 = arith.constant 0 : index
    %c0_29 = arith.constant 0 : index
    %33 = vector.load %arg12[%c0_27, %c0_28, %c0_29] : memref<4x8x8xf32, #tpu.memory_space<vmem>>, vector<4x8x8xf32>
    %34 = vector.broadcast %21 : vector<4x8x1xf32> to vector<4x8x8xf32>
    %35 = arith.mulf %34, %33 : vector<4x8x8xf32>
    %36 = arith.addf %35, %32 : vector<4x8x8xf32>
    %c0_30 = arith.constant 0 : index
    %c0_31 = arith.constant 0 : index
    %c0_32 = arith.constant 0 : index
    %37 = vector.load %arg12[%c0_30, %c0_31, %c0_32] : memref<4x8x8xf32, #tpu.memory_space<vmem>>, vector<4x8x8xf32>
    tpu.vector_store %arg12[%c0_30, %c0_31, %c0_32], %36 {strides = array<i32>} : memref<4x8x8xf32, #tpu.memory_space<vmem>>, vector<4x8x8xf32>,
    %c0_33 = arith.constant 0 : index
    %c0_34 = arith.constant 0 : index
    %c0_35 = arith.constant 0 : index
    %38 = vector.load %arg10[%c0_33, %c0_34, %c0_35] : memref<4x8x1xf32, #tpu.memory_space<vmem>>, vector<4x8x1xf32>
    tpu.vector_store %arg10[%c0_33, %c0_34, %c0_35], %19 {strides = array<i32>} : memref<4x8x1xf32, #tpu.memory_space<vmem>>, vector<4x8x1xf32>,
    %c0_i32_36 = arith.constant 0 : i32
    %39 = arith.cmpi eq, %arg2, %c0_i32_36 : i32
    %40 = arith.extui %39 : i1 to i32
    %c0_i32_37 = arith.constant 0 : i32
    %41 = arith.cmpi ne, %40, %c0_i32_37 : i32
    scf.if %41 {
      %c0_38 = arith.constant 0 : index
      %c0_39 = arith.constant 0 : index
      %c0_40 = arith.constant 0 : index
      %42 = vector.load %arg12[%c0_38, %c0_39, %c0_40] : memref<4x8x8xf32, #tpu.memory_space<vmem>>, vector<4x8x8xf32>
      %c0_41 = arith.constant 0 : index
      %c0_42 = arith.constant 0 : index
      %c0_43 = arith.constant 0 : index
      %43 = vector.load %arg11[%c0_41, %c0_42, %c0_43] : memref<4x8x1xf32, #tpu.memory_space<vmem>>, vector<4x8x1xf32>
      %44 = tpu.reciprocal %43 {approx = true} : vector<4x8x1xf32> -> vector<4x8x1xf32>
      %45 = vector.broadcast %44 : vector<4x8x1xf32> to vector<4x8x8xf32>
      %46 = arith.mulf %42, %45 : vector<4x8x8xf32>
      %47 = arith.truncf %46 : vector<4x8x8xf32> to vector<4x8x8xbf16>
      %c0_44 = arith.constant 0 : index
      %c0_45 = arith.constant 0 : index
      %c0_46 = arith.constant 0 : index
      %48 = vector.load %arg7[%c0_44, %c0_45, %c0_46] : memref<4x8x32xbf16, #tpu.memory_space<vmem>>, vector<4x8x32xbf16>
      %cst_47 = arith.constant dense<0.000000e+00> : vector<4x8x32xf32>
      %49 = tpu.matmul %47, %48, %cst_47 {dimension_numbers = #tpu.dot_dimension_numbers<[2], [1], [1], [2], [0, 0, 0, 1, 1, 2], [0], [0]>} : vector<4x8x8xbf16>, vector<4x8x32xbf16>, vector<4x8x32xf32> -> vector<4x8x32xf32>
      %cst_48 = arith.constant dense<0.000000e+00> : vector<8x32xf32>
      %50 = vector.multi_reduction <add>, %49, %cst_48 [0] : vector<4x8x32xf32> to vector<8x32xf32>
      %c0_49 = arith.constant 0 : index
      %c0_50 = arith.constant 0 : index
      %51 = vector.load %arg8[%c0_49, %c0_50] : memref<1x32xf32, #tpu.memory_space<vmem>>, vector<1x32xf32>
      %52 = vector.broadcast %51 : vector<1x32xf32> to vector<8x32xf32>
      %53 = arith.addf %50, %52 : vector<8x32xf32>
      %c0_51 = arith.constant 0 : index
      %c0_52 = arith.constant 0 : index
      %c0_53 = arith.constant 0 : index
      %54 = vector.load %arg9[%c0_51, %c0_52, %c0_53] : memref<1x8x32xf32, #tpu.memory_space<vmem>>, vector<1x8x32xf32>
      %55 = vector.shape_cast %54 : vector<1x8x32xf32> to vector<8x32xf32>
      %56 = vector.shape_cast %53 : vector<8x32xf32> to vector<1x8x32xf32>
      tpu.vector_store %arg9[%c0_51, %c0_52, %c0_53], %56 {strides = array<i32>} : memref<1x8x32xf32, #tpu.memory_space<vmem>>, vector<1x8x32xf32>,
    } else {
    }
    return
  }
  func.func @transform_0(%arg0: i32, %arg1: i32, %arg2: i32) -> (i32, i32, i32, i32) {
    %c0_i32 = arith.constant 0 : i32
    %c0_i32_0 = arith.constant 0 : i32
    %c0_i32_1 = arith.constant 0 : i32
    return %arg0, %c0_i32, %arg1, %c0_i32_0 : i32, i32, i32, i32
  }
  func.func @transform_1(%arg0: i32, %arg1: i32, %arg2: i32) -> (i32, i32, i32, i32) {
    %c0_i32 = arith.constant 0 : i32
    %c0_i32_0 = arith.constant 0 : i32
    %c0_i32_1 = arith.constant 0 : i32
    return %arg0, %c0_i32, %arg2, %c0_i32_0 : i32, i32, i32, i32
  }
  func.func @transform_2(%arg0: i32, %arg1: i32, %arg2: i32) -> (i32, i32, i32, i32) {
    %c0_i32 = arith.constant 0 : i32
    %c0_i32_0 = arith.constant 0 : i32
    %c0_i32_1 = arith.constant 0 : i32
    return %arg0, %c0_i32, %arg2, %c0_i32_0 : i32, i32, i32, i32
  }
  func.func @transform_3(%arg0: i32, %arg1: i32, %arg2: i32) -> (i32, i32, i32) {
    %c0_i32 = arith.constant 0 : i32
    return %arg0, %arg1, %arg2 : i32, i32, i32
  }
  func.func @transform_4(%arg0: i32, %arg1: i32, %arg2: i32) -> (i32, i32, i32) {
    %c0_i32 = arith.constant 0 : i32
    %c0_i32_0 = arith.constant 0 : i32
    %c0_i32_1 = arith.constant 0 : i32
    %c0_i32_2 = arith.constant 0 : i32
    return %c0_i32, %c0_i32_0, %c0_i32_1 : i32, i32, i32
  }
  func.func @transform_5(%arg0: i32, %arg1: i32, %arg2: i32) -> (i32, i32) {
    %c0_i32 = arith.constant 0 : i32
    %c0_i32_0 = arith.constant 0 : i32
    %c0_i32_1 = arith.constant 0 : i32
    return %c0_i32, %c0_i32_0 : i32, i32
  }
  func.func @transform_6(%arg0: i32, %arg1: i32, %arg2: i32) -> (i32, i32, i32) {
    %c0_i32 = arith.constant 0 : i32
    %c0_i32_0 = arith.constant 0 : i32
    return %arg0, %arg1, %c0_i32 : i32, i32, i32
  }
}

</mosaic_0001>

<llo_original>
// kernel: tpu_custom_call.1
$region0: #{tpu_custom_call.1}
  #allocation0 [shape = 'u32[]', space=smem, size = 0x4, offset = 0x4, fixed_abs, tag = 'smem constant byte address 0x4 - core index']
  #allocation1 [shape = 'u32[144,128]{1,0:T(1,128)}', space=vmem, size = 0x12000, scoped, tag = 'internal scratch']
  #allocation2 [shape = 'f32[4,8,1]{2,1,0:T(8,128)}', space=vmem, size = 0x4000, scoped, tag = 'scratch operand']
  #allocation3 [shape = 'f32[4,8,1]{2,1,0:T(8,128)}', space=vmem, size = 0x4000, scoped, tag = 'scratch operand']
  #allocation4 [shape = 'f32[4,8,8]{2,1,0:T(8,128)}', space=vmem, size = 0x4000, scoped, tag = 'scratch operand']
  %s0 = inlined_call_operand.hbm [shape: bf16[2,4,8,8], index: 0, kind: input, shape index: {}]
  %s1 = inlined_call_operand.hbm [shape: bf16[2,4,8,8], index: 1, kind: input, shape index: {}]
  %s2 = inlined_call_operand.hbm [shape: bf16[2,4,8,8], index: 2, kind: input, shape index: {}]
  %s3 = inlined_call_operand.vmem [shape: bf16[2,8,8], index: 3, kind: input, shape index: {}]
  %s4 = inlined_call_operand.hbm [shape: bf16[4,8,32], index: 4, kind: input, shape index: {}]
  %s5 = inlined_call_operand.vmem [shape: f32[1,32], index: 5, kind: input, shape index: {}]
  %s6 = inlined_call_operand.hbm [shape: f32[2,8,32], index: 6, kind: output, shape index: {}]
  %s7 = sld [smem:[#allocation0]]
  $region81: #{tpu_custom_call.1} parent=0
    _
  %s9 = ssub.s32 1, %s7
  %s10 = scalar_select 0, %s9, %s7
  $region1: #{tpu_custom_call.1} parent=0
    #allocation5 [shape = 'u8[16384]{0}', space=vmem, size = 0x4000, scoped, tag = 'input window, operand 0']
    #allocation6 [shape = 's32[2]{0}', space=sflag, size = 0x8, scoped, tag = 'scoped memory for tpu_custom_call.1']
    #allocation7 [shape = 's32[2]{0}', space=sflag, size = 0x8, scoped, tag = 'scoped memory for tpu_custom_call.1']
    #allocation8 [shape = 'u8[16384]{0}', space=vmem, size = 0x4000, scoped, tag = 'input window, operand 1']
    #allocation9 [shape = 's32[2]{0}', space=sflag, size = 0x8, scoped, tag = 'scoped memory for tpu_custom_call.1']
    #allocation10 [shape = 'u8[16384]{0}', space=vmem, size = 0x4000, scoped, tag = 'input window, operand 2']
    #allocation11 [shape = 'u8[8192]{0}', space=vmem, size = 0x2000, scoped, tag = 'input window, operand 4, single buffered']
    #allocation12 [shape = 's32[1]{0}', space=sflag, size = 0x4, scoped, tag = 'scoped memory for tpu_custom_call.1']
    #allocation13 [shape = 'u8[8192]{0}', space=vmem, size = 0x2000, scoped, tag = 'output window, operand 0']
    %11 = vsyncpa [#allocation6], 0
    %s12 = scalar_lea.sflag [#allocation6], 1
    %13 = vsyncpa %s12, 0
    %14 = vsyncpa [#allocation9], 0
    %s15 = scalar_lea.sflag [#allocation9], 1
    %16 = vsyncpa %s15, 0
    %17 = vsyncpa [#allocation12], 0
    %18 = vsyncpa [#allocation7], 0
    %s19 = scalar_lea.sflag [#allocation7], 1
    %20 = vsyncpa %s19, 0
    loop: start=0, step=1, limit=4
    $region2: #{tpu_custom_call.1} parent=1 // loop_pre_header
      _
    $region3: #{tpu_custom_call.1} parent=1 // loop_header
      %s22 = sphi 0, %s26
      %p23 = scmp.ge.s32.totalorder %s22, 4
      %s29 = sphi 0, %s48
      %s30 = sphi 0, %s44
      %s31 = sphi 0, %s40
      %s32 = sphi 0, %s29
      %s33 = sphi 0, %s30
      %s34 = sphi 0, %s31
      %s35 = sphi 0, %s32
      %s36 = sphi 0, %s33
      %s37 = sphi 0, %s34
      %s53 = sphi 0, %s55
      %s56 = sphi 0, %s53
      %s57 = sphi 0, %s56
      %s73 = sphi 0, %s57
      %s81 = sphi 0, %s83
      %s84 = sphi 0, %s81
      %s85 = sphi 0, %s84
      %s101 = sphi 0, %s85
      %s109 = sphi 0, %s111
      %s112 = sphi 0, %s109
      %s113 = sphi 0, %s112
      %s129 = sphi 0, %s113
      %s139 = sphi 0, %s141
      %s142 = sphi 0, %s139
      %s143 = sphi 0, %s142
      %s159 = sphi 0, %s143
      %s163 = sphi 0, %s163
      %s165 = sphi 0, %s163
      %s166 = sphi 0, %s165
      %s180 = sphi 0, %s166
      %s184 = sphi 0, %s184
      %s186 = sphi 0, %s184
      %s187 = sphi 0, %s186
      %s201 = sphi 0, %s187
      %s209 = sphi 0, %s211
      %s212 = sphi 0, %s209
      %s213 = sphi 0, %s212
      %s229 = sphi 0, %s213
    $region4: #{tpu_custom_call.1} parent=1 // loop_header_branch
      %25 = sbr.rel (%p23) target = $region8
    $region5: #{tpu_custom_call.1} parent=1 // loop_body
      %s27 = ssub.s32 %s22, 1
      %s28 = ssub.s32 %s22, 2
      %s38 = sadd.s32 1, %s31
      %p39 = scmp.ge.s32.totalorder %s38, 1
      %s40 = scalar_select %p39, 0, %s38
      %s41 = sadd.s32 1, %s30
      %s42 = scalar_select %p39, %s41, %s30
      %p43 = scmp.ge.s32.totalorder %s42, 1
      %s44 = scalar_select %p43, 0, %s42
      %s45 = sadd.s32 1, %s29
      %s46 = scalar_select %p43, %s45, %s29
      %p47 = scmp.ge.s32.totalorder %s46, 2
      %s48 = scalar_select %p47, 0, %s46
      %s49 = ssub.s32 %s29, %s48
      %s50 = ssub.s32 %s30, %s44
      %s51 = sor.u32 %s49, %s50
      %p52 = scmp.eq.s32.totalorder %s51, 0
      %s54 = sadd.s32 %s53, 1
      %s55 = scalar_select %p52, %s53, %s54
      %p58 = pneg %p52
      %p59 = scmp.eq.s32.totalorder %s22, 1
      %p60 = por %p58, %p59
      %p61 = scmp.ne.s32.totalorder %s53, %s56
      %p62 = scmp.eq.s32.totalorder %s22, 0
      %p63 = por %p61, %p62
      %p64 = scmp.ne.s32.totalorder %s53, %s56
      %p65 = scmp.eq.s32.totalorder %s27, 1
      %p66 = por %p64, %p65
      %p67 = scmp.ne.s32.totalorder %s56, %s57
      %p68 = scmp.eq.s32.totalorder %s27, 0
      %p69 = por %p67, %p68
      %p70 = scmp.ne.s32.totalorder %s56, %s57
      %p71 = scmp.eq.s32.totalorder %s28, 1
      %p72 = por %p70, %p71
      %p74 = scmp.ne.s32.totalorder %s57, %s73
      %p75 = scmp.eq.s32.totalorder %s28, 0
      %p76 = por %p74, %p75
      %s77 = ssub.s32 %s29, %s48
      %s78 = ssub.s32 %s31, %s40
      %s79 = sor.u32 %s77, %s78
      %p80 = scmp.eq.s32.totalorder %s79, 0
      %s82 = sadd.s32 %s81, 1
      %s83 = scalar_select %p80, %s81, %s82
      %p86 = pneg %p80
      %p87 = scmp.eq.s32.totalorder %s22, 1
      %p88 = por %p86, %p87
      %p89 = scmp.ne.s32.totalorder %s81, %s84
      %p90 = scmp.eq.s32.totalorder %s22, 0
      %p91 = por %p89, %p90
      %p92 = scmp.ne.s32.totalorder %s81, %s84
      %p93 = scmp.eq.s32.totalorder %s27, 1
      %p94 = por %p92, %p93
      %p95 = scmp.ne.s32.totalorder %s84, %s85
      %p96 = scmp.eq.s32.totalorder %s27, 0
      %p97 = por %p95, %p96
      %p98 = scmp.ne.s32.totalorder %s84, %s85
      %p99 = scmp.eq.s32.totalorder %s28, 1
      %p100 = por %p98, %p99
      %p102 = scmp.ne.s32.totalorder %s85, %s101
      %p103 = scmp.eq.s32.totalorder %s28, 0
      %p104 = por %p102, %p103
      %s105 = ssub.s32 %s29, %s48
      %s106 = ssub.s32 %s31, %s40
      %s107 = sor.u32 %s105, %s106
      %p108 = scmp.eq.s32.totalorder %s107, 0
      %s110 = sadd.s32 %s109, 1
      %s111 = scalar_select %p108, %s109, %s110
      %p114 = pneg %p108
      %p115 = scmp.eq.s32.totalorder %s22, 1
      %p116 = por %p114, %p115
      %p117 = scmp.ne.s32.totalorder %s109, %s112
      %p118 = scmp.eq.s32.totalorder %s22, 0
      %p119 = por %p117, %p118
      %p120 = scmp.ne.s32.totalorder %s109, %s112
      %p121 = scmp.eq.s32.totalorder %s27, 1
      %p122 = por %p120, %p121
      %p123 = scmp.ne.s32.totalorder %s112, %s113
      %p124 = scmp.eq.s32.totalorder %s27, 0
      %p125 = por %p123, %p124
      %p126 = scmp.ne.s32.totalorder %s112, %s113
      %p127 = scmp.eq.s32.totalorder %s28, 1
      %p128 = por %p126, %p127
      %p130 = scmp.ne.s32.totalorder %s113, %s129
      %p131 = scmp.eq.s32.totalorder %s28, 0
      %p132 = por %p130, %p131
      %s133 = ssub.s32 %s29, %s48
      %s134 = ssub.s32 %s30, %s44
      %s135 = sor.u32 %s133, %s134
      %s136 = ssub.s32 %s31, %s40
      %s137 = sor.u32 %s135, %s136
      %p138 = scmp.eq.s32.totalorder %s137, 0
      %s140 = sadd.s32 %s139, 1
      %s141 = scalar_select %p138, %s139, %s140
      %p144 = pneg %p138
      %p145 = scmp.eq.s32.totalorder %s22, 1
      %p146 = por %p144, %p145
      %p147 = scmp.ne.s32.totalorder %s139, %s142
      %p148 = scmp.eq.s32.totalorder %s22, 0
      %p149 = por %p147, %p148
      %p150 = scmp.ne.s32.totalorder %s139, %s142
      %p151 = scmp.eq.s32.totalorder %s27, 1
      %p152 = por %p150, %p151
      %p153 = scmp.ne.s32.totalorder %s142, %s143
      %p154 = scmp.eq.s32.totalorder %s27, 0
      %p155 = por %p153, %p154
      %p156 = scmp.ne.s32.totalorder %s142, %s143
      %p157 = scmp.eq.s32.totalorder %s28, 1
      %p158 = por %p156, %p157
      %p160 = scmp.ne.s32.totalorder %s143, %s159
      %p161 = scmp.eq.s32.totalorder %s28, 0
      %p162 = por %p160, %p161
      %s164 = sadd.s32 %s163, 1
      %p167 = scmp.eq.s32.totalorder %s22, 1
      %p168 = scmp.ne.s32.totalorder %s163, %s165
      %p169 = scmp.eq.s32.totalorder %s22, 0
      %p170 = por %p168, %p169
      %p171 = scmp.ne.s32.totalorder %s163, %s165
      %p172 = scmp.eq.s32.totalorder %s27, 1
      %p173 = por %p171, %p172
      %p174 = scmp.ne.s32.totalorder %s165, %s166
      %p175 = scmp.eq.s32.totalorder %s27, 0
      %p176 = por %p174, %p175
      %p177 = scmp.ne.s32.totalorder %s165, %s166
      %p178 = scmp.eq.s32.totalorder %s28, 1
      %p179 = por %p177, %p178
      %p181 = scmp.ne.s32.totalorder %s166, %s180
      %p182 = scmp.eq.s32.totalorder %s28, 0
      %p183 = por %p181, %p182
      %s185 = sadd.s32 %s184, 1
      %p188 = scmp.eq.s32.totalorder %s22, 1
      %p189 = scmp.ne.s32.totalorder %s184, %s186
      %p190 = scmp.eq.s32.totalorder %s22, 0
      %p191 = por %p189, %p190
      %p192 = scmp.ne.s32.totalorder %s184, %s186
      %p193 = scmp.eq.s32.totalorder %s27, 1
      %p194 = por %p192, %p193
      %p195 = scmp.ne.s32.totalorder %s186, %s187
      %p196 = scmp.eq.s32.totalorder %s27, 0
      %p197 = por %p195, %p196
      %p198 = scmp.ne.s32.totalorder %s186, %s187
      %p199 = scmp.eq.s32.totalorder %s28, 1
      %p200 = por %p198, %p199
      %p202 = scmp.ne.s32.totalorder %s187, %s201
      %p203 = scmp.eq.s32.totalorder %s28, 0
      %p204 = por %p202, %p203
      %s205 = ssub.s32 %s29, %s48
      %s206 = ssub.s32 %s30, %s44
      %s207 = sor.u32 %s205, %s206
      %p208 = scmp.eq.s32.totalorder %s207, 0
      %s210 = sadd.s32 %s209, 1
      %s211 = scalar_select %p208, %s209, %s210
      %p214 = pneg %p208
      %p215 = scmp.eq.s32.totalorder %s22, 1
      %p216 = por %p214, %p215
      %p217 = scmp.ne.s32.totalorder %s209, %s212
      %p218 = scmp.eq.s32.totalorder %s22, 0
      %p219 = por %p217, %p218
      %p220 = scmp.ne.s32.totalorder %s209, %s212
      %p221 = scmp.eq.s32.totalorder %s27, 1
      %p222 = por %p220, %p221
      %p223 = scmp.ne.s32.totalorder %s212, %s213
      %p224 = scmp.eq.s32.totalorder %s27, 0
      %p225 = por %p223, %p224
      %p226 = scmp.ne.s32.totalorder %s212, %s213
      %p227 = scmp.eq.s32.totalorder %s28, 1
      %p228 = por %p226, %p227
      %p230 = scmp.ne.s32.totalorder %s213, %s229
      %p231 = scmp.eq.s32.totalorder %s28, 0
      %p232 = por %p230, %p231
      %p233 = scmp.le.s32.totalorder 1, %s22
      %p234 = scmp.lt.s32.totalorder %s22, 3
      %p235 = pnand %p233, %p234
      %p236 = pneg %p235
      // Predicated region
      $region9: #{tpu_custom_call.1} parent=5 // pred_check
        _
      $region10: #{tpu_custom_call.1} parent=5 // pred_check_branch
        %238 = sbr.rel (%p235) target = $region12
      $region11: #{tpu_custom_call.1} parent=5 // pred_region
        %s239 = ssub.s32 %s22, 1
        // Predicated region
        $region13: #{tpu_custom_call.1} parent=11 // pred_check
          %p240 = pneg %p176
        $region14: #{tpu_custom_call.1} parent=11 // pred_check_branch
          %242 = sbr.rel (%p240) target = $region16
        $region15: #{tpu_custom_call.1} parent=11 // pred_region
          %s244 = ssub.s32 256, 256
          %245 = vsyncadd [#allocation12], %s244
          %s246 = sshll.u32 [#allocation11], 4
          %s247 = int_to_ptr.vmem [resolvable:$true] %s246
          %252 = dma.hbm_to_vmem [thread:$0]  %s4, 256, %s247, [#allocation12], 64, 64, 4
        $region16: #{tpu_custom_call.1} parent=11 // pred_fallthru
          _
        // Predicated region
        $region17: #{tpu_custom_call.1} parent=11 // pred_check
          %p253 = pneg %p197
        $region18: #{tpu_custom_call.1} parent=11 // pred_check_branch
          %255 = sbr.rel (%p253) target = $region20
        $region19: #{tpu_custom_call.1} parent=11 // pred_region
          _
        $region20: #{tpu_custom_call.1} parent=11 // pred_fallthru
          _
      $region12: #{tpu_custom_call.1} parent=5 // pred_fallthru
        _
      %p256 = scmp.lt.s32.totalorder %s22, 2
      // Predicated region
      $region21: #{tpu_custom_call.1} parent=5 // pred_check
        %p257 = pneg %p256
      $region22: #{tpu_custom_call.1} parent=5 // pred_check_branch
        %259 = sbr.rel (%p257) target = $region24
      $region23: #{tpu_custom_call.1} parent=5 // pred_region
        // Predicated region
        $region25: #{tpu_custom_call.1} parent=23 // pred_check
          %p260 = pneg %p63
        $region26: #{tpu_custom_call.1} parent=23 // pred_check_branch
          %262 = sbr.rel (%p260) target = $region28
        $region27: #{tpu_custom_call.1} parent=23 // pred_region
          %s263 = sand.u32 %s53, 1
          %s264 = scalar_lea.sflag [#allocation6], %s263
          %s265 = sand.u32 %s53, 1
          %s266 = smul.addr %s265, 16
          %s267 = scalar_lea.vmem [#allocation5], %s266
          %s269 = ssub.s32 256, 256
          %270 = vsyncadd %s264, %s269
          %s271 = smul.addr %s29, 4
          %s272 = sadd.s32 %s30, %s271
          %s273 = smul.addr %s272, 64
          %s274 = scalar_lea.hbm %s0, %s273
          %s275 = sshll.u32 %s267, 4
          %s276 = int_to_ptr.vmem [resolvable:$true] %s275
          %281 = dma.hbm_to_vmem [thread:$0]  %s274, 256, %s276, %s264, 64, 64, 4
        $region28: #{tpu_custom_call.1} parent=23 // pred_fallthru
          _
        // Predicated region
        $region29: #{tpu_custom_call.1} parent=23 // pred_check
          %p282 = pneg %p91
        $region30: #{tpu_custom_call.1} parent=23 // pred_check_branch
          %284 = sbr.rel (%p282) target = $region32
        $region31: #{tpu_custom_call.1} parent=23 // pred_region
          %s285 = sand.u32 %s22, 1
          %s286 = scalar_lea.sflag [#allocation9], %s285
          %s287 = sand.u32 %s81, 1
          %s288 = smul.addr %s287, 16
          %s289 = scalar_lea.vmem [#allocation8], %s288
          %s291 = ssub.s32 256, 256
          %292 = vsyncadd %s286, %s291
          %s293 = smul.addr %s29, 4
          %s294 = sadd.s32 %s31, %s293
          %s295 = smul.addr %s294, 64
          %s296 = scalar_lea.hbm %s1, %s295
          %s297 = sshll.u32 %s289, 4
          %s298 = int_to_ptr.vmem [resolvable:$true] %s297
          %303 = dma.hbm_to_vmem [thread:$0]  %s296, 256, %s298, %s286, 64, 64, 4
        $region32: #{tpu_custom_call.1} parent=23 // pred_fallthru
          _
        // Predicated region
        $region33: #{tpu_custom_call.1} parent=23 // pred_check
          %p304 = pneg %p119
        $region34: #{tpu_custom_call.1} parent=23 // pred_check_branch
          %306 = sbr.rel (%p304) target = $region36
        $region35: #{tpu_custom_call.1} parent=23 // pred_region
          %s307 = sand.u32 %s22, 1
          %s308 = scalar_lea.sflag [#allocation9], %s307
          %s309 = sand.u32 %s109, 1
          %s310 = smul.addr %s309, 16
          %s311 = scalar_lea.vmem [#allocation10], %s310
          %s313 = ssub.s32 256, 256
          %314 = vsyncadd %s308, %s313
          %s315 = smul.addr %s29, 4
          %s316 = sadd.s32 %s31, %s315
          %s317 = smul.addr %s316, 64
          %s318 = scalar_lea.hbm %s2, %s317
          %s319 = sshll.u32 %s311, 4
          %s320 = int_to_ptr.vmem [resolvable:$true] %s319
          %325 = dma.hbm_to_vmem [thread:$0]  %s318, 256, %s320, %s308, 64, 64, 4
        $region36: #{tpu_custom_call.1} parent=23 // pred_fallthru
          _
        // Predicated region
        $region37: #{tpu_custom_call.1} parent=23 // pred_check
          %p326 = pneg %p149
        $region38: #{tpu_custom_call.1} parent=23 // pred_check_branch
          %328 = sbr.rel (%p326) target = $region40
        $region39: #{tpu_custom_call.1} parent=23 // pred_region
          %p329 = scmp.lt.s32.totalorder %s29, 1
          %s330 = scalar_select %p329, %s29, 1
          %p331 = scmp.lt.s32.totalorder %s30, 0
          %s332 = scalar_select %p331, %s30, 0
          %p333 = scmp.lt.s32.totalorder %s31, 0
          %s334 = scalar_select %p333, %s31, 0
          %s335 = sadd.s32 %s334, %s332
          %s336 = sadd.s32 %s335, %s330
          %s337 = smul.addr %s336, 4
          %s338 = scalar_lea.vmem %s3, %s337
        $region40: #{tpu_custom_call.1} parent=23 // pred_fallthru
          _
      $region24: #{tpu_custom_call.1} parent=5 // pred_fallthru
        _
      %p339 = scmp.le.s32.totalorder 1, %s22
      %p340 = scmp.lt.s32.totalorder %s22, 3
      %p341 = pnand %p339, %p340
      %p342 = pneg %p341
      // Predicated region
      $region41: #{tpu_custom_call.1} parent=5 // pred_check
        _
      $region42: #{tpu_custom_call.1} parent=5 // pred_check_branch
        %344 = sbr.rel (%p341) target = $region44
      $region43: #{tpu_custom_call.1} parent=5 // pred_region
        %s345 = ssub.s32 %s22, 1
        %s346 = sand.u32 %s56, 1
        %s347 = scalar_lea.sflag [#allocation6], %s346
        %s348 = sand.u32 %s56, 1
        %s349 = smul.addr %s348, 16
        %s350 = scalar_lea.vmem [#allocation5], %s349
        // Predicated region
        $region45: #{tpu_custom_call.1} parent=43 // pred_check
          %p351 = pneg %p69
        $region46: #{tpu_custom_call.1} parent=43 // pred_check_branch
          %353 = sbr.rel (%p351) target = $region48
        $region47: #{tpu_custom_call.1} parent=43 // pred_region
          %354 = dma.done %s347, 256
        $region48: #{tpu_custom_call.1} parent=43 // pred_fallthru
          _
        %s355 = sand.u32 %s27, 1
        %s356 = scalar_lea.sflag [#allocation9], %s355
        %s357 = sand.u32 %s84, 1
        %s358 = smul.addr %s357, 16
        %s359 = scalar_lea.vmem [#allocation8], %s358
        // Predicated region
        $region49: #{tpu_custom_call.1} parent=43 // pred_check
          %p360 = pneg %p97
        $region50: #{tpu_custom_call.1} parent=43 // pred_check_branch
          %362 = sbr.rel (%p360) target = $region52
        $region51: #{tpu_custom_call.1} parent=43 // pred_region
          %363 = dma.done %s356, 256
        $region52: #{tpu_custom_call.1} parent=43 // pred_fallthru
          _
        %s364 = sand.u32 %s27, 1
        %s365 = scalar_lea.sflag [#allocation9], %s364
        %s366 = sand.u32 %s112, 1
        %s367 = smul.addr %s366, 16
        %s368 = scalar_lea.vmem [#allocation10], %s367
        // Predicated region
        $region53: #{tpu_custom_call.1} parent=43 // pred_check
          %p369 = pneg %p125
        $region54: #{tpu_custom_call.1} parent=43 // pred_check_branch
          %371 = sbr.rel (%p369) target = $region56
        $region55: #{tpu_custom_call.1} parent=43 // pred_region
          %372 = dma.done %s365, 256
        $region56: #{tpu_custom_call.1} parent=43 // pred_fallthru
          _
        // Predicated region
        $region57: #{tpu_custom_call.1} parent=43 // pred_check
          %p373 = pneg %p176
        $region58: #{tpu_custom_call.1} parent=43 // pred_check_branch
          %375 = sbr.rel (%p373) target = $region60
        $region59: #{tpu_custom_call.1} parent=43 // pred_region
          %376 = dma.done [#allocation12], 256
        $region60: #{tpu_custom_call.1} parent=43 // pred_fallthru
          _
        %s377 = sand.u32 %s56, 1
        %s378 = scalar_lea.sflag [#allocation6], %s377
        %s379 = sand.u32 %s56, 1
        %s380 = smul.addr %s379, 16
        %s381 = scalar_lea.vmem [#allocation5], %s380
        %p382 = pneg %p69
        %p383 = pneg %p66
        %s384 = sand.u32 %s27, 1
        %s385 = scalar_lea.sflag [#allocation9], %s384
        %s386 = sand.u32 %s84, 1
        %s387 = smul.addr %s386, 16
        %s388 = scalar_lea.vmem [#allocation8], %s387
        %p389 = pneg %p97
        %p390 = pneg %p94
        %s391 = sand.u32 %s27, 1
        %s392 = scalar_lea.sflag [#allocation9], %s391
        %s393 = sand.u32 %s112, 1
        %s394 = smul.addr %s393, 16
        %s395 = scalar_lea.vmem [#allocation10], %s394
        %p396 = pneg %p125
        %p397 = pneg %p122
        %p398 = scmp.lt.s32.totalorder %s32, 1
        %s399 = scalar_select %p398, %s32, 1
        %p400 = scmp.lt.s32.totalorder %s33, 0
        %s401 = scalar_select %p400, %s33, 0
        %p402 = scmp.lt.s32.totalorder %s34, 0
        %s403 = scalar_select %p402, %s34, 0
        %s404 = sadd.s32 %s403, %s401
        %s405 = sadd.s32 %s404, %s399
        %s406 = smul.addr %s405, 4
        %s407 = scalar_lea.vmem %s3, %s406
        %p408 = pneg %p155
        %p409 = pneg %p152
        %p410 = pneg %p176
        %p411 = pneg %p173
        %p412 = pneg %p197
        %p413 = pneg %p194
        %p414 = pneg %p225
        %p415 = pneg %p222
        %s416 = sand.u32 %s212, 1
        %s417 = scalar_lea.sflag [#allocation7], %s416
        %s418 = sand.u32 %s212, 1
        %s419 = smul.addr %s418, 8
        %s420 = scalar_lea.vmem [#allocation13], %s419
        %p421 = scmp.lt.s32.totalorder %s32, 1
        %s422 = scalar_select %p421, %s32, 1
        %p423 = scmp.lt.s32.totalorder %s33, 0
        %s424 = scalar_select %p423, %s33, 0
        %p425 = scmp.lt.s32.totalorder %s34, 0
        %s426 = scalar_select %p425, %s34, 0
        %s427 = sadd.s32 %s426, %s424
        %s428 = sadd.s32 %s427, %s422
        %s429 = smul.addr %s428, 4
        %s430 = scalar_lea.vmem %s3, %s429
        %p432 = scmp.eq.s32.totalorder %s34, 0
        // Predicated region
        $region61: #{tpu_custom_call.1} parent=43 // pred_check
          %p433 = pneg %p432
        $region62: #{tpu_custom_call.1} parent=43 // pred_check_branch
          %435 = sbr.rel (%p433) target = $region64
        $region63: #{tpu_custom_call.1} parent=43 // pred_region
          %vm436 = vcmask 7168
          %437 = vst.msk [vmem:[#allocation2] sm:$0xff] %vm436, -inf
          %438 = vst.msk [vmem:[#allocation2 + $0x8] sm:$0xff] %vm436, -inf
          %439 = vst.msk [vmem:[#allocation2 + $0x10] sm:$0xff] %vm436, -inf
          %440 = vst.msk [vmem:[#allocation2 + $0x18] sm:$0xff] %vm436, -inf
          %441 = vst.msk [vmem:[#allocation3] sm:$0xff] %vm436, 0.0
          %442 = vst.msk [vmem:[#allocation3 + $0x8] sm:$0xff] %vm436, 0.0
          %443 = vst.msk [vmem:[#allocation3 + $0x10] sm:$0xff] %vm436, 0.0
          %444 = vst.msk [vmem:[#allocation3 + $0x18] sm:$0xff] %vm436, 0.0
          %vm445 = vcmask 64512
          %446 = vst.msk [vmem:[#allocation4] sm:$0xff] %vm445, 0.0
          %447 = vst.msk [vmem:[#allocation4 + $0x8] sm:$0xff] %vm445, 0.0
          %448 = vst.msk [vmem:[#allocation4 + $0x10] sm:$0xff] %vm445, 0.0
          %449 = vst.msk [vmem:[#allocation4 + $0x18] sm:$0xff] %vm445, 0.0
        $region64: #{tpu_custom_call.1} parent=43 // pred_fallthru
          _
        %v450 = vld [vmem:[%s350] sm:$0xf]
        %v451 = vld [vmem:[%s350 + $0x4] sm:$0xf]
        %v452 = vld [vmem:[%s350 + $0x8] sm:$0xf]
        %v453 = vld [vmem:[%s350 + $0xc] sm:$0xf]
        %v454 = vld [vmem:[%s359] sm:$0xf]
        %v455 = vld [vmem:[%s359 + $0x4] sm:$0xf]
        %v456 = vld [vmem:[%s359 + $0x8] sm:$0xf]
        %v457 = vld [vmem:[%s359 + $0xc] sm:$0xf]
        %v458 = vld [vmem:[%s368] sm:$0xf]
        %v459 = vld [vmem:[%s368 + $0x4] sm:$0xf]
        %v460 = vld [vmem:[%s368 + $0x8] sm:$0xf]
        %v461 = vld [vmem:[%s368 + $0xc] sm:$0xf]
        %v462 = vld [vmem:[%s430] sm:$0xf]
        %v463 = vunpack.c.l.bf16 %v462
        %vm464 = vcmask 64512
        %v466 = vsel %vm464, %v450, 0
        %v469 = vsel %vm464, %v454, 0
        %471 = vmatprep.subr.bf16.mxu0 0
        %472 = vmatpush1.bf16.xpose.msra.mxu0 %v469
        %473 = vmatprep.subr.bf16.mxu0 0
        %474 = vmatpush1.bf16.xpose.msra.mxu0 0
        %475 = vmatprep.subr.bf16.mxu0 0
        %476 = vmatpush1.bf16.xpose.msra.mxu0 0
        %477 = vmatprep.subr.bf16.mxu0 0
        %478 = vmatpush1.bf16.xpose.msra.mxu0 0
        %479 = vmatprep.subr.bf16.mxu0 0
        %480 = vmatpush1.bf16.xpose.msra.mxu0 0
        %481 = vmatprep.subr.bf16.mxu0 0
        %482 = vmatpush1.bf16.xpose.msra.mxu0 0
        %483 = vmatprep.subr.bf16.mxu0 0
        %484 = vmatpush1.bf16.xpose.msra.mxu0 0
        %485 = vmatprep.subr.bf16.mxu0 0
        %486 = vmatpush1.bf16.xpose.msra.mxu0 0
        %487 = vmatprep.subr.bf16.mxu0 0
        %488 = vmatpush1.bf16.xpose.msra.mxu0 0
        %489 = vmatprep.subr.bf16.mxu0 0
        %490 = vmatpush1.bf16.xpose.msra.mxu0 0
        %491 = vmatprep.subr.bf16.mxu0 0
        %492 = vmatpush1.bf16.xpose.msra.mxu0 0
        %493 = vmatprep.subr.bf16.mxu0 0
        %494 = vmatpush1.bf16.xpose.msra.mxu0 0
        %495 = vmatprep.subr.bf16.mxu0 0
        %496 = vmatpush1.bf16.xpose.msra.mxu0 0
        %497 = vmatprep.subr.bf16.mxu0 0
        %498 = vmatpush1.bf16.xpose.msra.mxu0 0
        %499 = vmatprep.subr.bf16.mxu0 0
        %500 = vmatpush1.bf16.xpose.msra.mxu0 0
        %501 = vmatprep.subr.bf16.mxu0 0
        %502 = vmatpush1.bf16.xpose.msra.mxu0 0
        %503 = vmatprep.mubr.bf16.mxu0 0
        %504 = vmatmul.mubr.bf16.gmra.mrb[0].mxu0 %v466
        %v505 = vpop.f32.mrb[0].mxu0
        %v506 = vadd.f32 %v463, %v505
        %v507 = vpop.f32.mrb[0].mxu0
        %v508 = vpop.f32.mrb[0].mxu0
        %v509 = vpop.f32.mrb[0].mxu0
        %510 = vdwg.mxu0
        %v512 = vsel %vm464, %v451, 0
        %v515 = vsel %vm464, %v455, 0
        %517 = vmatprep.subr.bf16.mxu0 0
        %518 = vmatpush1.bf16.xpose.msra.mxu0 %v515
        %519 = vmatprep.subr.bf16.mxu0 0
        %520 = vmatpush1.bf16.xpose.msra.mxu0 0
        %521 = vmatprep.subr.bf16.mxu0 0
        %522 = vmatpush1.bf16.xpose.msra.mxu0 0
        %523 = vmatprep.subr.bf16.mxu0 0
        %524 = vmatpush1.bf16.xpose.msra.mxu0 0
        %525 = vmatprep.subr.bf16.mxu0 0
        %526 = vmatpush1.bf16.xpose.msra.mxu0 0
        %527 = vmatprep.subr.bf16.mxu0 0
        %528 = vmatpush1.bf16.xpose.msra.mxu0 0
        %529 = vmatprep.subr.bf16.mxu0 0
        %530 = vmatpush1.bf16.xpose.msra.mxu0 0
        %531 = vmatprep.subr.bf16.mxu0 0
        %532 = vmatpush1.bf16.xpose.msra.mxu0 0
        %533 = vmatprep.subr.bf16.mxu0 0
        %534 = vmatpush1.bf16.xpose.msra.mxu0 0
        %535 = vmatprep.subr.bf16.mxu0 0
        %536 = vmatpush1.bf16.xpose.msra.mxu0 0
        %537 = vmatprep.subr.bf16.mxu0 0
        %538 = vmatpush1.bf16.xpose.msra.mxu0 0
        %539 = vmatprep.subr.bf16.mxu0 0
        %540 = vmatpush1.bf16.xpose.msra.mxu0 0
        %541 = vmatprep.subr.bf16.mxu0 0
        %542 = vmatpush1.bf16.xpose.msra.mxu0 0
        %543 = vmatprep.subr.bf16.mxu0 0
        %544 = vmatpush1.bf16.xpose.msra.mxu0 0
        %545 = vmatprep.subr.bf16.mxu0 0
        %546 = vmatpush1.bf16.xpose.msra.mxu0 0
        %547 = vmatprep.subr.bf16.mxu0 0
        %548 = vmatpush1.bf16.xpose.msra.mxu0 0
        %549 = vmatprep.mubr.bf16.mxu0 0
        %550 = vmatmul.mubr.bf16.gmra.mrb[0].mxu0 %v512
        %v551 = vpop.f32.mrb[0].mxu0
        %v552 = vadd.f32 %v463, %v551
        %v553 = vpop.f32.mrb[0].mxu0
        %v554 = vpop.f32.mrb[0].mxu0
        %v555 = vpop.f32.mrb[0].mxu0
        %556 = vdwg.mxu0
        %v558 = vsel %vm464, %v452, 0
        %v561 = vsel %vm464, %v456, 0
        %563 = vmatprep.subr.bf16.mxu0 0
        %564 = vmatpush1.bf16.xpose.msra.mxu0 %v561
        %565 = vmatprep.subr.bf16.mxu0 0
        %566 = vmatpush1.bf16.xpose.msra.mxu0 0
        %567 = vmatprep.subr.bf16.mxu0 0
        %568 = vmatpush1.bf16.xpose.msra.mxu0 0
        %569 = vmatprep.subr.bf16.mxu0 0
        %570 = vmatpush1.bf16.xpose.msra.mxu0 0
        %571 = vmatprep.subr.bf16.mxu0 0
        %572 = vmatpush1.bf16.xpose.msra.mxu0 0
        %573 = vmatprep.subr.bf16.mxu0 0
        %574 = vmatpush1.bf16.xpose.msra.mxu0 0
        %575 = vmatprep.subr.bf16.mxu0 0
        %576 = vmatpush1.bf16.xpose.msra.mxu0 0
        %577 = vmatprep.subr.bf16.mxu0 0
        %578 = vmatpush1.bf16.xpose.msra.mxu0 0
        %579 = vmatprep.subr.bf16.mxu0 0
        %580 = vmatpush1.bf16.xpose.msra.mxu0 0
        %581 = vmatprep.subr.bf16.mxu0 0
        %582 = vmatpush1.bf16.xpose.msra.mxu0 0
        %583 = vmatprep.subr.bf16.mxu0 0
        %584 = vmatpush1.bf16.xpose.msra.mxu0 0
        %585 = vmatprep.subr.bf16.mxu0 0
        %586 = vmatpush1.bf16.xpose.msra.mxu0 0
        %587 = vmatprep.subr.bf16.mxu0 0
        %588 = vmatpush1.bf16.xpose.msra.mxu0 0
        %589 = vmatprep.subr.bf16.mxu0 0
        %590 = vmatpush1.bf16.xpose.msra.mxu0 0
        %591 = vmatprep.subr.bf16.mxu0 0
        %592 = vmatpush1.bf16.xpose.msra.mxu0 0
        %593 = vmatprep.subr.bf16.mxu0 0
        %594 = vmatpush1.bf16.xpose.msra.mxu0 0
        %595 = vmatprep.mubr.bf16.mxu0 0
        %596 = vmatmul.mubr.bf16.gmra.mrb[0].mxu0 %v558
        %v597 = vpop.f32.mrb[0].mxu0
        %v598 = vadd.f32 %v463, %v597
        %v599 = vpop.f32.mrb[0].mxu0
        %v600 = vpop.f32.mrb[0].mxu0
        %v601 = vpop.f32.mrb[0].mxu0
        %602 = vdwg.mxu0
        %v604 = vsel %vm464, %v453, 0
        %v607 = vsel %vm464, %v457, 0
        %609 = vmatprep.subr.bf16.mxu0 0
        %610 = vmatpush1.bf16.xpose.msra.mxu0 %v607
        %611 = vmatprep.subr.bf16.mxu0 0
        %612 = vmatpush1.bf16.xpose.msra.mxu0 0
        %613 = vmatprep.subr.bf16.mxu0 0
        %614 = vmatpush1.bf16.xpose.msra.mxu0 0
        %615 = vmatprep.subr.bf16.mxu0 0
        %616 = vmatpush1.bf16.xpose.msra.mxu0 0
        %617 = vmatprep.subr.bf16.mxu0 0
        %618 = vmatpush1.bf16.xpose.msra.mxu0 0
        %619 = vmatprep.subr.bf16.mxu0 0
        %620 = vmatpush1.bf16.xpose.msra.mxu0 0
        %621 = vmatprep.subr.bf16.mxu0 0
        %622 = vmatpush1.bf16.xpose.msra.mxu0 0
        %623 = vmatprep.subr.bf16.mxu0 0
        %624 = vmatpush1.bf16.xpose.msra.mxu0 0
        %625 = vmatprep.subr.bf16.mxu0 0
        %626 = vmatpush1.bf16.xpose.msra.mxu0 0
        %627 = vmatprep.subr.bf16.mxu0 0
        %628 = vmatpush1.bf16.xpose.msra.mxu0 0
        %629 = vmatprep.subr.bf16.mxu0 0
        %630 = vmatpush1.bf16.xpose.msra.mxu0 0
        %631 = vmatprep.subr.bf16.mxu0 0
        %632 = vmatpush1.bf16.xpose.msra.mxu0 0
        %633 = vmatprep.subr.bf16.mxu0 0
        %634 = vmatpush1.bf16.xpose.msra.mxu0 0
        %635 = vmatprep.subr.bf16.mxu0 0
        %636 = vmatpush1.bf16.xpose.msra.mxu0 0
        %637 = vmatprep.subr.bf16.mxu0 0
        %638 = vmatpush1.bf16.xpose.msra.mxu0 0
        %639 = vmatprep.subr.bf16.mxu0 0
        %640 = vmatpush1.bf16.xpose.msra.mxu0 0
        %641 = vmatprep.mubr.bf16.mxu0 0
        %642 = vmatmul.mubr.bf16.gmra.mrb[0].mxu0 %v604
        %v643 = vpop.f32.mrb[0].mxu0
        %v644 = vadd.f32 %v463, %v643
        %v645 = vpop.f32.mrb[0].mxu0
        %v646 = vpop.f32.mrb[0].mxu0
        %v647 = vpop.f32.mrb[0].mxu0
        %648 = vdwg.mxu0
        %v649 = vld [vmem:[#allocation2] sm:$0xff]
        %v650 = vld [vmem:[#allocation2 + $0x8] sm:$0xff]
        %v651 = vld [vmem:[#allocation2 + $0x10] sm:$0xff]
        %v652 = vld [vmem:[#allocation2 + $0x18] sm:$0xff]
        %v653 = vsel %vm464, %v506, -inf
        %654 = vmax.xlane.f32.xlu0 %v653
        %v655 = vpop.xlane.xlu0 %654
        %v656 = vsel %vm464, %v552, -inf
        %657 = vmax.xlane.f32.xlu0 %v656
        %v658 = vpop.xlane.xlu0 %657
        %v659 = vsel %vm464, %v598, -inf
        %660 = vmax.xlane.f32.xlu0 %v659
        %v661 = vpop.xlane.xlu0 %660
        %v662 = vsel %vm464, %v644, -inf
        %663 = vmax.xlane.f32.xlu0 %v662
        %v664 = vpop.xlane.xlu0 %663
        %v665 = vmax.f32 %v649, %v655
        %v666 = vmax.f32 %v650, %v658
        %v667 = vmax.f32 %v651, %v661
        %v668 = vmax.f32 %v652, %v664
        %v669 = vsub.f32 %v649, %v665
        %v670 = vsub.f32 %v650, %v666
        %v671 = vsub.f32 %v651, %v667
        %v672 = vsub.f32 %v652, %v668
        %v673 = vmul.f32 %v669, 1.442695
        %v674 = vpow.pop %v673
        %v675 = vmul.f32 %v670, 1.442695
        %v676 = vpow.pop %v675
        %v677 = vmul.f32 %v671, 1.442695
        %v678 = vpow.pop %v677
        %v679 = vmul.f32 %v672, 1.442695
        %v680 = vpow.pop %v679
        %682 = vset.pattern.permute.xlu0 0
        %683 = vperm.xlu0 %682, %v665
        %v684 = vpop.permute.xlu0 %683
        %687 = vset.pattern.permute.xlu0 0
        %688 = vperm.xlu0 %687, %v666
        %v689 = vpop.permute.xlu0 %688
        %692 = vset.pattern.permute.xlu0 0
        %693 = vperm.xlu0 %692, %v667
        %v694 = vpop.permute.xlu0 %693
        %697 = vset.pattern.permute.xlu0 0
        %698 = vperm.xlu0 %697, %v668
        %v699 = vpop.permute.xlu0 %698
        %v701 = vsub.f32 %v506, %v684
        %v702 = vsub.f32 %v552, %v689
        %v703 = vsub.f32 %v598, %v694
        %v704 = vsub.f32 %v644, %v699
        %v705 = vmul.f32 %v701, 1.442695
        %v706 = vpow.pop %v705
        %v707 = vmul.f32 %v702, 1.442695
        %v708 = vpow.pop %v707
        %v709 = vmul.f32 %v703, 1.442695
        %v710 = vpow.pop %v709
        %v711 = vmul.f32 %v704, 1.442695
        %v712 = vpow.pop %v711
        %v713 = vld [vmem:[#allocation3] sm:$0xff]
        %v714 = vld [vmem:[#allocation3 + $0x8] sm:$0xff]
        %v715 = vld [vmem:[#allocation3 + $0x10] sm:$0xff]
        %v716 = vld [vmem:[#allocation3 + $0x18] sm:$0xff]
        %v717 = vmul.f32 %v674, %v713
        %v718 = vmul.f32 %v676, %v714
        %v719 = vmul.f32 %v678, %v715
        %v720 = vmul.f32 %v680, %v716
        %v721 = vsel %vm464, %v706, 0.0
        %722 = vadd.xlane.f32.xlu0 %v721
        %v723 = vpop.xlane.xlu0 %722
        %v724 = vsel %vm464, %v708, 0.0
        %725 = vadd.xlane.f32.xlu0 %v724
        %v726 = vpop.xlane.xlu0 %725
        %v727 = vsel %vm464, %v710, 0.0
        %728 = vadd.xlane.f32.xlu0 %v727
        %v729 = vpop.xlane.xlu0 %728
        %v730 = vsel %vm464, %v712, 0.0
        %731 = vadd.xlane.f32.xlu0 %v730
        %v732 = vpop.xlane.xlu0 %731
        %v733 = vadd.f32 %v717, %v723
        %v734 = vadd.f32 %v718, %v726
        %v735 = vadd.f32 %v719, %v729
        %v736 = vadd.f32 %v720, %v732
        %vm737 = vcmask 7168
        %738 = vst.msk [vmem:[#allocation3] sm:$0xff] %vm737, %v733
        %739 = vst.msk [vmem:[#allocation3 + $0x8] sm:$0xff] %vm737, %v734
        %740 = vst.msk [vmem:[#allocation3 + $0x10] sm:$0xff] %vm737, %v735
        %741 = vst.msk [vmem:[#allocation3 + $0x18] sm:$0xff] %vm737, %v736
        %v742 = vpack.c.bf16 %v706, %v706
        %v743 = vpack.c.bf16 %v708, %v708
        %v744 = vpack.c.bf16 %v710, %v710
        %v745 = vpack.c.bf16 %v712, %v712
        %v747 = vsel %vm464, %v742, 0
        %vm749 = vcmask 1043456
        %v751 = vsel %vm749, %v458, 0
        %753 = vmatprep.subr.bf16.mxu0 0
        %754 = vmatpush1.bf16.msra.mxu0 %v751
        %755 = vmatprep.subr.bf16.mxu0 0
        %756 = vmatpush1.bf16.msra.mxu0 0
        %757 = vmatprep.subr.bf16.mxu0 0
        %758 = vmatpush1.bf16.msra.mxu0 0
        %759 = vmatprep.subr.bf16.mxu0 0
        %760 = vmatpush1.bf16.msra.mxu0 0
        %761 = vmatprep.subr.bf16.mxu0 0
        %762 = vmatpush1.bf16.msra.mxu0 0
        %763 = vmatprep.subr.bf16.mxu0 0
        %764 = vmatpush1.bf16.msra.mxu0 0
        %765 = vmatprep.subr.bf16.mxu0 0
        %766 = vmatpush1.bf16.msra.mxu0 0
        %767 = vmatprep.subr.bf16.mxu0 0
        %768 = vmatpush1.bf16.msra.mxu0 0
        %769 = vmatprep.subr.bf16.mxu0 0
        %770 = vmatpush1.bf16.msra.mxu0 0
        %771 = vmatprep.subr.bf16.mxu0 0
        %772 = vmatpush1.bf16.msra.mxu0 0
        %773 = vmatprep.subr.bf16.mxu0 0
        %774 = vmatpush1.bf16.msra.mxu0 0
        %775 = vmatprep.subr.bf16.mxu0 0
        %776 = vmatpush1.bf16.msra.mxu0 0
        %777 = vmatprep.subr.bf16.mxu0 0
        %778 = vmatpush1.bf16.msra.mxu0 0
        %779 = vmatprep.subr.bf16.mxu0 0
        %780 = vmatpush1.bf16.msra.mxu0 0
        %781 = vmatprep.subr.bf16.mxu0 0
        %782 = vmatpush1.bf16.msra.mxu0 0
        %783 = vmatprep.subr.bf16.mxu0 0
        %784 = vmatpush1.bf16.msra.mxu0 0
        %785 = vmatprep.mubr.bf16.mxu0 0
        %786 = vmatmul.mubr.bf16.gmra.mrb[0].mxu0 %v747
        %v787 = vpop.f32.mrb[0].mxu0
        %v788 = vadd.f32 0.0, %v787
        %v789 = vpop.f32.mrb[0].mxu0
        %v790 = vpop.f32.mrb[0].mxu0
        %v791 = vpop.f32.mrb[0].mxu0
        %792 = vdwg.mxu0
        %v794 = vsel %vm464, %v743, 0
        %v797 = vsel %vm749, %v459, 0
        %799 = vmatprep.subr.bf16.mxu0 0
        %800 = vmatpush1.bf16.msra.mxu0 %v797
        %801 = vmatprep.subr.bf16.mxu0 0
        %802 = vmatpush1.bf16.msra.mxu0 0
        %803 = vmatprep.subr.bf16.mxu0 0
        %804 = vmatpush1.bf16.msra.mxu0 0
        %805 = vmatprep.subr.bf16.mxu0 0
        %806 = vmatpush1.bf16.msra.mxu0 0
        %807 = vmatprep.subr.bf16.mxu0 0
        %808 = vmatpush1.bf16.msra.mxu0 0
        %809 = vmatprep.subr.bf16.mxu0 0
        %810 = vmatpush1.bf16.msra.mxu0 0
        %811 = vmatprep.subr.bf16.mxu0 0
        %812 = vmatpush1.bf16.msra.mxu0 0
        %813 = vmatprep.subr.bf16.mxu0 0
        %814 = vmatpush1.bf16.msra.mxu0 0
        %815 = vmatprep.subr.bf16.mxu0 0
        %816 = vmatpush1.bf16.msra.mxu0 0
        %817 = vmatprep.subr.bf16.mxu0 0
        %818 = vmatpush1.bf16.msra.mxu0 0
        %819 = vmatprep.subr.bf16.mxu0 0
        %820 = vmatpush1.bf16.msra.mxu0 0
        %821 = vmatprep.subr.bf16.mxu0 0
        %822 = vmatpush1.bf16.msra.mxu0 0
        %823 = vmatprep.subr.bf16.mxu0 0
        %824 = vmatpush1.bf16.msra.mxu0 0
        %825 = vmatprep.subr.bf16.mxu0 0
        %826 = vmatpush1.bf16.msra.mxu0 0
        %827 = vmatprep.subr.bf16.mxu0 0
        %828 = vmatpush1.bf16.msra.mxu0 0
        %829 = vmatprep.subr.bf16.mxu0 0
        %830 = vmatpush1.bf16.msra.mxu0 0
        %831 = vmatprep.mubr.bf16.mxu0 0
        %832 = vmatmul.mubr.bf16.gmra.mrb[0].mxu0 %v794
        %v833 = vpop.f32.mrb[0].mxu0
        %v834 = vadd.f32 0.0, %v833
        %v835 = vpop.f32.mrb[0].mxu0
        %v836 = vpop.f32.mrb[0].mxu0
        %v837 = vpop.f32.mrb[0].mxu0
        %838 = vdwg.mxu0
        %v840 = vsel %vm464, %v744, 0
        %v843 = vsel %vm749, %v460, 0
        %845 = vmatprep.subr.bf16.mxu0 0
        %846 = vmatpush1.bf16.msra.mxu0 %v843
        %847 = vmatprep.subr.bf16.mxu0 0
        %848 = vmatpush1.bf16.msra.mxu0 0
        %849 = vmatprep.subr.bf16.mxu0 0
        %850 = vmatpush1.bf16.msra.mxu0 0
        %851 = vmatprep.subr.bf16.mxu0 0
        %852 = vmatpush1.bf16.msra.mxu0 0
        %853 = vmatprep.subr.bf16.mxu0 0
        %854 = vmatpush1.bf16.msra.mxu0 0
        %855 = vmatprep.subr.bf16.mxu0 0
        %856 = vmatpush1.bf16.msra.mxu0 0
        %857 = vmatprep.subr.bf16.mxu0 0
        %858 = vmatpush1.bf16.msra.mxu0 0
        %859 = vmatprep.subr.bf16.mxu0 0
        %860 = vmatpush1.bf16.msra.mxu0 0
        %861 = vmatprep.subr.bf16.mxu0 0
        %862 = vmatpush1.bf16.msra.mxu0 0
        %863 = vmatprep.subr.bf16.mxu0 0
        %864 = vmatpush1.bf16.msra.mxu0 0
        %865 = vmatprep.subr.bf16.mxu0 0
        %866 = vmatpush1.bf16.msra.mxu0 0
        %867 = vmatprep.subr.bf16.mxu0 0
        %868 = vmatpush1.bf16.msra.mxu0 0
        %869 = vmatprep.subr.bf16.mxu0 0
        %870 = vmatpush1.bf16.msra.mxu0 0
        %871 = vmatprep.subr.bf16.mxu0 0
        %872 = vmatpush1.bf16.msra.mxu0 0
        %873 = vmatprep.subr.bf16.mxu0 0
        %874 = vmatpush1.bf16.msra.mxu0 0
        %875 = vmatprep.subr.bf16.mxu0 0
        %876 = vmatpush1.bf16.msra.mxu0 0
        %877 = vmatprep.mubr.bf16.mxu0 0
        %878 = vmatmul.mubr.bf16.gmra.mrb[0].mxu0 %v840
        %v879 = vpop.f32.mrb[0].mxu0
        %v880 = vadd.f32 0.0, %v879
        %v881 = vpop.f32.mrb[0].mxu0
        %v882 = vpop.f32.mrb[0].mxu0
        %v883 = vpop.f32.mrb[0].mxu0
        %884 = vdwg.mxu0
        %v886 = vsel %vm464, %v745, 0
        %v889 = vsel %vm749, %v461, 0
        %891 = vmatprep.subr.bf16.mxu0 0
        %892 = vmatpush1.bf16.msra.mxu0 %v889
        %893 = vmatprep.subr.bf16.mxu0 0
        %894 = vmatpush1.bf16.msra.mxu0 0
        %895 = vmatprep.subr.bf16.mxu0 0
        %896 = vmatpush1.bf16.msra.mxu0 0
        %897 = vmatprep.subr.bf16.mxu0 0
        %898 = vmatpush1.bf16.msra.mxu0 0
        %899 = vmatprep.subr.bf16.mxu0 0
        %900 = vmatpush1.bf16.msra.mxu0 0
        %901 = vmatprep.subr.bf16.mxu0 0
        %902 = vmatpush1.bf16.msra.mxu0 0
        %903 = vmatprep.subr.bf16.mxu0 0
        %904 = vmatpush1.bf16.msra.mxu0 0
        %905 = vmatprep.subr.bf16.mxu0 0
        %906 = vmatpush1.bf16.msra.mxu0 0
        %907 = vmatprep.subr.bf16.mxu0 0
        %908 = vmatpush1.bf16.msra.mxu0 0
        %909 = vmatprep.subr.bf16.mxu0 0
        %910 = vmatpush1.bf16.msra.mxu0 0
        %911 = vmatprep.subr.bf16.mxu0 0
        %912 = vmatpush1.bf16.msra.mxu0 0
        %913 = vmatprep.subr.bf16.mxu0 0
        %914 = vmatpush1.bf16.msra.mxu0 0
        %915 = vmatprep.subr.bf16.mxu0 0
        %916 = vmatpush1.bf16.msra.mxu0 0
        %917 = vmatprep.subr.bf16.mxu0 0
        %918 = vmatpush1.bf16.msra.mxu0 0
        %919 = vmatprep.subr.bf16.mxu0 0
        %920 = vmatpush1.bf16.msra.mxu0 0
        %921 = vmatprep.subr.bf16.mxu0 0
        %922 = vmatpush1.bf16.msra.mxu0 0
        %923 = vmatprep.mubr.bf16.mxu0 0
        %924 = vmatmul.mubr.bf16.gmra.mrb[0].mxu0 %v886
        %v925 = vpop.f32.mrb[0].mxu0
        %v926 = vadd.f32 0.0, %v925
        %v927 = vpop.f32.mrb[0].mxu0
        %v928 = vpop.f32.mrb[0].mxu0
        %v929 = vpop.f32.mrb[0].mxu0
        %930 = vdwg.mxu0
        %v931 = vld [vmem:[#allocation4] sm:$0xff]
        %v932 = vld [vmem:[#allocation4 + $0x8] sm:$0xff]
        %v933 = vld [vmem:[#allocation4 + $0x10] sm:$0xff]
        %v934 = vld [vmem:[#allocation4 + $0x18] sm:$0xff]
        %936 = vset.pattern.permute.xlu0 0
        %937 = vperm.xlu0 %936, %v674
        %v938 = vpop.permute.xlu0 %937
        %941 = vset.pattern.permute.xlu0 0
        %942 = vperm.xlu0 %941, %v676
        %v943 = vpop.permute.xlu0 %942
        %946 = vset.pattern.permute.xlu0 0
        %947 = vperm.xlu0 %946, %v678
        %v948 = vpop.permute.xlu0 %947
        %951 = vset.pattern.permute.xlu0 0
        %952 = vperm.xlu0 %951, %v680
        %v953 = vpop.permute.xlu0 %952
        %v955 = vmul.f32 %v938, %v931
        %v956 = vmul.f32 %v943, %v932
        %v957 = vmul.f32 %v948, %v933
        %v958 = vmul.f32 %v953, %v934
        %v959 = vadd.f32 %v955, %v788
        %v960 = vadd.f32 %v956, %v834
        %v961 = vadd.f32 %v957, %v880
        %v962 = vadd.f32 %v958, %v926
        %963 = vst.msk [vmem:[#allocation4] sm:$0xff] %vm464, %v959
        %964 = vst.msk [vmem:[#allocation4 + $0x8] sm:$0xff] %vm464, %v960
        %965 = vst.msk [vmem:[#allocation4 + $0x10] sm:$0xff] %vm464, %v961
        %966 = vst.msk [vmem:[#allocation4 + $0x18] sm:$0xff] %vm464, %v962
        %967 = vst.msk [vmem:[#allocation2] sm:$0xff] %vm737, %v665
        %968 = vst.msk [vmem:[#allocation2 + $0x8] sm:$0xff] %vm737, %v666
        %969 = vst.msk [vmem:[#allocation2 + $0x10] sm:$0xff] %vm737, %v667
        %970 = vst.msk [vmem:[#allocation2 + $0x18] sm:$0xff] %vm737, %v668
        // Predicated region
        $region65: #{tpu_custom_call.1} parent=43 // pred_check
          %p971 = pneg %p432
        $region66: #{tpu_custom_call.1} parent=43 // pred_check_branch
          %973 = sbr.rel (%p971) target = $region68
        $region67: #{tpu_custom_call.1} parent=43 // pred_region
          %v974 = vld [vmem:[#allocation4] sm:$0xff]
          %v975 = vld [vmem:[#allocation4 + $0x8] sm:$0xff]
          %v976 = vld [vmem:[#allocation4 + $0x10] sm:$0xff]
          %v977 = vld [vmem:[#allocation4 + $0x18] sm:$0xff]
          %v978 = vld [vmem:[#allocation3] sm:$0xff]
          %v979 = vld [vmem:[#allocation3 + $0x8] sm:$0xff]
          %v980 = vld [vmem:[#allocation3 + $0x10] sm:$0xff]
          %v981 = vld [vmem:[#allocation3 + $0x18] sm:$0xff]
          %v982 = vrcp.pop %v978
          %v983 = vrcp.pop %v979
          %v984 = vrcp.pop %v980
          %v985 = vrcp.pop %v981
          %987 = vset.pattern.permute.xlu0 0
          %988 = vperm.xlu0 %987, %v982
          %v989 = vpop.permute.xlu0 %988
          %992 = vset.pattern.permute.xlu0 0
          %993 = vperm.xlu0 %992, %v983
          %v994 = vpop.permute.xlu0 %993
          %997 = vset.pattern.permute.xlu0 0
          %998 = vperm.xlu0 %997, %v984
          %v999 = vpop.permute.xlu0 %998
          %1002 = vset.pattern.permute.xlu0 0
          %1003 = vperm.xlu0 %1002, %v985
          %v1004 = vpop.permute.xlu0 %1003
          %v1006 = vmul.f32 %v974, %v989
          %v1007 = vmul.f32 %v975, %v994
          %v1008 = vmul.f32 %v976, %v999
          %v1009 = vmul.f32 %v977, %v1004
          %v1010 = vpack.c.bf16 %v1006, %v1006
          %v1011 = vpack.c.bf16 %v1007, %v1007
          %v1012 = vpack.c.bf16 %v1008, %v1008
          %v1013 = vpack.c.bf16 %v1009, %v1009
          %v1014 = vld [vmem:[#allocation11] sm:$0xf]
          %v1015 = vld [vmem:[#allocation11 + $0x4] sm:$0xf]
          %v1016 = vld [vmem:[#allocation11 + $0x8] sm:$0xf]
          %v1017 = vld [vmem:[#allocation11 + $0xc] sm:$0xf]
          %v1019 = vsel %vm464, %v1010, 0
          %v1022 = vsel %vm749, %v1014, 0
          %1024 = vmatprep.subr.bf16.mxu0 0
          %1025 = vmatpush1.bf16.msra.mxu0 %v1022
          %1026 = vmatprep.subr.bf16.mxu0 0
          %1027 = vmatpush1.bf16.msra.mxu0 0
          %1028 = vmatprep.subr.bf16.mxu0 0
          %1029 = vmatpush1.bf16.msra.mxu0 0
          %1030 = vmatprep.subr.bf16.mxu0 0
          %1031 = vmatpush1.bf16.msra.mxu0 0
          %1032 = vmatprep.subr.bf16.mxu0 0
          %1033 = vmatpush1.bf16.msra.mxu0 0
          %1034 = vmatprep.subr.bf16.mxu0 0
          %1035 = vmatpush1.bf16.msra.mxu0 0
          %1036 = vmatprep.subr.bf16.mxu0 0
          %1037 = vmatpush1.bf16.msra.mxu0 0
          %1038 = vmatprep.subr.bf16.mxu0 0
          %1039 = vmatpush1.bf16.msra.mxu0 0
          %1040 = vmatprep.subr.bf16.mxu0 0
          %1041 = vmatpush1.bf16.msra.mxu0 0
          %1042 = vmatprep.subr.bf16.mxu0 0
          %1043 = vmatpush1.bf16.msra.mxu0 0
          %1044 = vmatprep.subr.bf16.mxu0 0
          %1045 = vmatpush1.bf16.msra.mxu0 0
          %1046 = vmatprep.subr.bf16.mxu0 0
          %1047 = vmatpush1.bf16.msra.mxu0 0
          %1048 = vmatprep.subr.bf16.mxu0 0
          %1049 = vmatpush1.bf16.msra.mxu0 0
          %1050 = vmatprep.subr.bf16.mxu0 0
          %1051 = vmatpush1.bf16.msra.mxu0 0
          %1052 = vmatprep.subr.bf16.mxu0 0
          %1053 = vmatpush1.bf16.msra.mxu0 0
          %1054 = vmatprep.subr.bf16.mxu0 0
          %1055 = vmatpush1.bf16.msra.mxu0 0
          %1056 = vmatprep.mubr.bf16.mxu0 0
          %1057 = vmatmul.mubr.bf16.gmra.mrb[0].mxu0 %v1019
          %v1058 = vpop.f32.mrb[0].mxu0
          %v1059 = vadd.f32 0.0, %v1058
          %v1060 = vpop.f32.mrb[0].mxu0
          %v1061 = vpop.f32.mrb[0].mxu0
          %v1062 = vpop.f32.mrb[0].mxu0
          %1063 = vdwg.mxu0
          %v1065 = vsel %vm464, %v1011, 0
          %v1068 = vsel %vm749, %v1015, 0
          %1070 = vmatprep.subr.bf16.mxu0 0
          %1071 = vmatpush1.bf16.msra.mxu0 %v1068
          %1072 = vmatprep.subr.bf16.mxu0 0
          %1073 = vmatpush1.bf16.msra.mxu0 0
          %1074 = vmatprep.subr.bf16.mxu0 0
          %1075 = vmatpush1.bf16.msra.mxu0 0
          %1076 = vmatprep.subr.bf16.mxu0 0
          %1077 = vmatpush1.bf16.msra.mxu0 0
          %1078 = vmatprep.subr.bf16.mxu0 0
          %1079 = vmatpush1.bf16.msra.mxu0 0
          %1080 = vmatprep.subr.bf16.mxu0 0
          %1081 = vmatpush1.bf16.msra.mxu0 0
          %1082 = vmatprep.subr.bf16.mxu0 0
          %1083 = vmatpush1.bf16.msra.mxu0 0
          %1084 = vmatprep.subr.bf16.mxu0 0
          %1085 = vmatpush1.bf16.msra.mxu0 0
          %1086 = vmatprep.subr.bf16.mxu0 0
          %1087 = vmatpush1.bf16.msra.mxu0 0
          %1088 = vmatprep.subr.bf16.mxu0 0
          %1089 = vmatpush1.bf16.msra.mxu0 0
          %1090 = vmatprep.subr.bf16.mxu0 0
          %1091 = vmatpush1.bf16.msra.mxu0 0
          %1092 = vmatprep.subr.bf16.mxu0 0
          %1093 = vmatpush1.bf16.msra.mxu0 0
          %1094 = vmatprep.subr.bf16.mxu0 0
          %1095 = vmatpush1.bf16.msra.mxu0 0
          %1096 = vmatprep.subr.bf16.mxu0 0
          %1097 = vmatpush1.bf16.msra.mxu0 0
          %1098 = vmatprep.subr.bf16.mxu0 0
          %1099 = vmatpush1.bf16.msra.mxu0 0
          %1100 = vmatprep.subr.bf16.mxu0 0
          %1101 = vmatpush1.bf16.msra.mxu0 0
          %1102 = vmatprep.mubr.bf16.mxu0 0
          %1103 = vmatmul.mubr.bf16.gmra.mrb[0].mxu0 %v1065
          %v1104 = vpop.f32.mrb[0].mxu0
          %v1105 = vadd.f32 0.0, %v1104
          %v1106 = vpop.f32.mrb[0].mxu0
          %v1107 = vpop.f32.mrb[0].mxu0
          %v1108 = vpop.f32.mrb[0].mxu0
          %1109 = vdwg.mxu0
          %v1111 = vsel %vm464, %v1012, 0
          %v1114 = vsel %vm749, %v1016, 0
          %1116 = vmatprep.subr.bf16.mxu0 0
          %1117 = vmatpush1.bf16.msra.mxu0 %v1114
          %1118 = vmatprep.subr.bf16.mxu0 0
          %1119 = vmatpush1.bf16.msra.mxu0 0
          %1120 = vmatprep.subr.bf16.mxu0 0
          %1121 = vmatpush1.bf16.msra.mxu0 0
          %1122 = vmatprep.subr.bf16.mxu0 0
          %1123 = vmatpush1.bf16.msra.mxu0 0
          %1124 = vmatprep.subr.bf16.mxu0 0
          %1125 = vmatpush1.bf16.msra.mxu0 0
          %1126 = vmatprep.subr.bf16.mxu0 0
          %1127 = vmatpush1.bf16.msra.mxu0 0
          %1128 = vmatprep.subr.bf16.mxu0 0
          %1129 = vmatpush1.bf16.msra.mxu0 0
          %1130 = vmatprep.subr.bf16.mxu0 0
          %1131 = vmatpush1.bf16.msra.mxu0 0
          %1132 = vmatprep.subr.bf16.mxu0 0
          %1133 = vmatpush1.bf16.msra.mxu0 0
          %1134 = vmatprep.subr.bf16.mxu0 0
          %1135 = vmatpush1.bf16.msra.mxu0 0
          %1136 = vmatprep.subr.bf16.mxu0 0
          %1137 = vmatpush1.bf16.msra.mxu0 0
          %1138 = vmatprep.subr.bf16.mxu0 0
          %1139 = vmatpush1.bf16.msra.mxu0 0
          %1140 = vmatprep.subr.bf16.mxu0 0
          %1141 = vmatpush1.bf16.msra.mxu0 0
          %1142 = vmatprep.subr.bf16.mxu0 0
          %1143 = vmatpush1.bf16.msra.mxu0 0
          %1144 = vmatprep.subr.bf16.mxu0 0
          %1145 = vmatpush1.bf16.msra.mxu0 0
          %1146 = vmatprep.subr.bf16.mxu0 0
          %1147 = vmatpush1.bf16.msra.mxu0 0
          %1148 = vmatprep.mubr.bf16.mxu0 0
          %1149 = vmatmul.mubr.bf16.gmra.mrb[0].mxu0 %v1111
          %v1150 = vpop.f32.mrb[0].mxu0
          %v1151 = vadd.f32 0.0, %v1150
          %v1152 = vpop.f32.mrb[0].mxu0
          %v1153 = vpop.f32.mrb[0].mxu0
          %v1154 = vpop.f32.mrb[0].mxu0
          %1155 = vdwg.mxu0
          %v1157 = vsel %vm464, %v1013, 0
          %v1160 = vsel %vm749, %v1017, 0
          %1162 = vmatprep.subr.bf16.mxu0 0
          %1163 = vmatpush1.bf16.msra.mxu0 %v1160
          %1164 = vmatprep.subr.bf16.mxu0 0
          %1165 = vmatpush1.bf16.msra.mxu0 0
          %1166 = vmatprep.subr.bf16.mxu0 0
          %1167 = vmatpush1.bf16.msra.mxu0 0
          %1168 = vmatprep.subr.bf16.mxu0 0
          %1169 = vmatpush1.bf16.msra.mxu0 0
          %1170 = vmatprep.subr.bf16.mxu0 0
          %1171 = vmatpush1.bf16.msra.mxu0 0
          %1172 = vmatprep.subr.bf16.mxu0 0
          %1173 = vmatpush1.bf16.msra.mxu0 0
          %1174 = vmatprep.subr.bf16.mxu0 0
          %1175 = vmatpush1.bf16.msra.mxu0 0
          %1176 = vmatprep.subr.bf16.mxu0 0
          %1177 = vmatpush1.bf16.msra.mxu0 0
          %1178 = vmatprep.subr.bf16.mxu0 0
          %1179 = vmatpush1.bf16.msra.mxu0 0
          %1180 = vmatprep.subr.bf16.mxu0 0
          %1181 = vmatpush1.bf16.msra.mxu0 0
          %1182 = vmatprep.subr.bf16.mxu0 0
          %1183 = vmatpush1.bf16.msra.mxu0 0
          %1184 = vmatprep.subr.bf16.mxu0 0
          %1185 = vmatpush1.bf16.msra.mxu0 0
          %1186 = vmatprep.subr.bf16.mxu0 0
          %1187 = vmatpush1.bf16.msra.mxu0 0
          %1188 = vmatprep.subr.bf16.mxu0 0
          %1189 = vmatpush1.bf16.msra.mxu0 0
          %1190 = vmatprep.subr.bf16.mxu0 0
          %1191 = vmatpush1.bf16.msra.mxu0 0
          %1192 = vmatprep.subr.bf16.mxu0 0
          %1193 = vmatpush1.bf16.msra.mxu0 0
          %1194 = vmatprep.mubr.bf16.mxu0 0
          %1195 = vmatmul.mubr.bf16.gmra.mrb[0].mxu0 %v1157
          %v1196 = vpop.f32.mrb[0].mxu0
          %v1197 = vadd.f32 0.0, %v1196
          %v1198 = vpop.f32.mrb[0].mxu0
          %v1199 = vpop.f32.mrb[0].mxu0
          %v1200 = vpop.f32.mrb[0].mxu0
          %1201 = vdwg.mxu0
          %vm1202 = vcmask 261120
          %v1203 = vsel %vm1202, %v1059, 0.0
          %v1204 = vsel %vm1202, %v1105, 0.0
          %v1205 = vadd.f32 %v1203, %v1204
          %v1206 = vsel %vm1202, %v1151, 0.0
          %v1207 = vadd.f32 %v1205, %v1206
          %v1208 = vsel %vm1202, %v1197, 0.0
          %v1209 = vadd.f32 %v1207, %v1208
          %v1210 = vld [vmem:[%s5] sm:$0x1]
          %v1212 = vlaneseq
          %v1213 = vshrl.u32 %v1212, 7
          %v1214 = vsub.s32 0, %v1213
          %v1215 = vrot.slane %v1210, %v1214
          %v1217 = vadd.f32 %v1209, %v1215
          %1218 = vst.msk [vmem:[%s420] sm:$0xff] %vm1202, %v1217
        $region68: #{tpu_custom_call.1} parent=43 // pred_fallthru
          _
        %s1219 = sand.u32 %s212, 1
        %s1220 = scalar_lea.sflag [#allocation7], %s1219
        %s1221 = sand.u32 %s212, 1
        %s1222 = smul.addr %s1221, 8
        %s1223 = scalar_lea.vmem [#allocation13], %s1222
        // Predicated region
        $region69: #{tpu_custom_call.1} parent=43 // pred_check
          %p1224 = pneg %p222
        $region70: #{tpu_custom_call.1} parent=43 // pred_check_branch
          %1226 = sbr.rel (%p1224) target = $region72
        $region71: #{tpu_custom_call.1} parent=43 // pred_region
          %s1228 = ssub.s32 128, 128
          %1229 = vsyncadd %s1220, %s1228
          %s1230 = sadd.s32 %s33, %s32
          %s1231 = smul.addr %s1230, 128
          %s1232 = scalar_lea.hbm %s6, %s1231
          %s1234 = sshll.u32 %s1223, 4
          %s1235 = int_to_ptr.vmem [resolvable:$true] %s1234
          %1237 = dma.vmem_to_hbm [thread:$0]  %s1235, 128, %s1232, %s1220
        $region72: #{tpu_custom_call.1} parent=43 // pred_fallthru
          _
      $region44: #{tpu_custom_call.1} parent=5 // pred_fallthru
        _
      %p1238 = scmp.le.s32.totalorder 2, %s22
      // Predicated region
      $region73: #{tpu_custom_call.1} parent=5 // pred_check
        %p1239 = pneg %p1238
      $region74: #{tpu_custom_call.1} parent=5 // pred_check_branch
        %1241 = sbr.rel (%p1239) target = $region76
      $region75: #{tpu_custom_call.1} parent=5 // pred_region
        %s1242 = ssub.s32 %s22, 2
        // Predicated region
        $region77: #{tpu_custom_call.1} parent=75 // pred_check
          %p1243 = pneg %p228
        $region78: #{tpu_custom_call.1} parent=75 // pred_check_branch
          %1245 = sbr.rel (%p1243) target = $region80
        $region79: #{tpu_custom_call.1} parent=75 // pred_region
          %s1246 = sand.u32 %s213, 1
          %s1247 = scalar_lea.sflag [#allocation7], %s1246
          %s1248 = sand.u32 %s213, 1
          %s1249 = smul.addr %s1248, 8
          %s1250 = scalar_lea.vmem [#allocation13], %s1249
          %1251 = dma.done %s1247, 128
        $region80: #{tpu_custom_call.1} parent=75 // pred_fallthru
          _
      $region76: #{tpu_custom_call.1} parent=5 // pred_fallthru
        _
    $region6: #{tpu_custom_call.1} parent=1 // loop_footer
      %s26 = sadd.s32 1, %s22
    $region7: #{tpu_custom_call.1} parent=1 // loop_footer_branch
      %21 = sbr.rel target = $region3
    $region8: #{tpu_custom_call.1} parent=1 // loop_exit
      _
    %1252 = vsyncpa [#allocation6], 1
    %s1253 = scalar_lea.sflag [#allocation6], 1
    %1254 = vsyncpa %s1253, 1
    %1255 = vsyncpa [#allocation9], 1
    %s1256 = scalar_lea.sflag [#allocation9], 1
    %1257 = vsyncpa %s1256, 1
    %1258 = vsyncpa [#allocation12], 1
    %1259 = vsyncpa [#allocation7], 1
    %s1260 = scalar_lea.sflag [#allocation7], 1
    %1261 = vsyncpa %s1260, 1

</llo_original>
